<compile_context>
chip_gen: v6e
topology: v6e:2x2x1
jax: 0.10.0
libtpu: 0.0.40
codegen_flags: <defaults>
</compile_context>

<pallas_src>
import functools
import math

import numpy as np

import jax
import jax.numpy as jnp
from jax.experimental import pallas as pl
from jax.experimental.pallas import tpu as pltpu


# ------------------------------ Pallas kernel ------------------------------- #

def _attnpool_kernel(x_ref, pos_ref, wq_ref, wk_ref, wv_ref, wc_ref,
                     bq_ref, bk_ref, bv_ref, bc_ref, o_ref, *, num_heads):
    """Fused AttentionPool2d forward for one batch element.

    x_ref   : (1, C, HW)      bf16  raw NCHW activations (spatial flattened)
    pos_ref : (HW+1, C)       bf16  positional embedding (cls + spatial)
    wq/wk/wv: (C, C)          bf16  projection weights, (in, out) layout
    wc_ref  : (C, Cout)       bf16  output projection weight, (in, out) layout
    bq/bk/bv: (1, C)          f32
    bc_ref  : (1, Cout)       f32
    o_ref   : (1, L, Cout)    f32   token-major output (cls token first)

    The attention scale (head_dim**-0.5) is already folded into wq/bq.
    """
    f32 = jnp.float32
    bf16 = jnp.bfloat16

    # Build tokens: transpose to (HW, C), prepend mean token, add pos. emb.
    xt = x_ref[0].astype(f32).T                               # (HW, C)
    mean_tok = jnp.mean(xt, axis=0, keepdims=True)            # (1, C)
    tok = jnp.concatenate([mean_tok, xt], axis=0)             # (L, C)
    tok = (tok + pos_ref[...].astype(f32)).astype(bf16)       # (L, C) bf16

    # Q/K/V projections (MXU: bf16 in, f32 accumulate). Scale folded into wq/bq.
    q = (jnp.dot(tok, wq_ref[...], preferred_element_type=f32)
         + bq_ref[...]).astype(bf16)
    k = (jnp.dot(tok, wk_ref[...], preferred_element_type=f32)
         + bk_ref[...]).astype(bf16)
    v = (jnp.dot(tok, wv_ref[...], preferred_element_type=f32)
         + bv_ref[...]).astype(bf16)

    L, C = q.shape
    hd = C // num_heads

    # Per-head softmax attention; heads statically unrolled (small L, hd).
    head_outs = []
    for h in range(num_heads):
        lo = h * hd
        qh = q[:, lo:lo + hd]
        kh = k[:, lo:lo + hd]
        vh = v[:, lo:lo + hd]
        # scores = qh @ kh^T (contract last dims of both, no explicit transpose)
        s = jax.lax.dot_general(qh, kh, (((1,), (1,)), ((), ())),
                                preferred_element_type=f32)    # (L, L)
        s = s - jnp.max(s, axis=-1, keepdims=True)
        e = jnp.exp(s)
        p = e * pl.reciprocal(jnp.sum(e, axis=-1, keepdims=True), approx=True)
        head_outs.append(jnp.dot(p.astype(bf16), vh,
                                 preferred_element_type=f32))  # (L, hd)
    attn = jnp.concatenate(head_outs, axis=-1).astype(bf16)    # (L, C)

    # Output projection (K = C, a single deep contraction), lane-dense store.
    out = jnp.dot(attn, wc_ref[...], preferred_element_type=f32) + bc_ref[...]
    o_ref[...] = out[None].astype(o_ref.dtype)                 # (1, L, Cout)


# ------------------------------- Host wrapper -------------------------------- #

def _build_pos_embedding(pos_param, spacial_dim, H, W):
    """cls pos + (bilinearly resized) spatial pos -> (H*W + 1, C)."""
    C = pos_param.shape[-1]
    cls_pos = pos_param[0:1]
    spatial = pos_param[1:].reshape(spacial_dim, spacial_dim, C)
    if (H, W) != (spacial_dim, spacial_dim):
        # TODO(synk): jax.image.resize matches F.interpolate(align_corners=False)
        # for upsampling; antialiased downsampling differs slightly from torch.
        spatial = jax.image.resize(spatial, (H, W, C), method="bilinear")
    return jnp.concatenate([cls_pos, spatial.reshape(H * W, C)], axis=0)


def attention_pool2d(x_nchw, params, *, num_heads, spacial_dim):
    B, C, H, W = x_nchw.shape
    HW = H * W
    L = HW + 1
    Cout = params["wc"].shape[0]
    assert C % num_heads == 0
    hd = C // num_heads
    scale = 1.0 / math.sqrt(hd)

    pos = _build_pos_embedding(params["pos"], spacial_dim, H, W)       # (L, C)

    # bf16 at the boundary; weights pre-transposed to (in, out); attention
    # scale folded into the Q weight and bias (free algebra, no kernel mul).
    x_tok = x_nchw.reshape(B, C, HW).astype(jnp.bfloat16)  # free reshape of NCHW
    pos_bf = pos.astype(jnp.bfloat16)
    wq_t = (params["wq"].T * scale).astype(jnp.bfloat16)
    wk_t = params["wk"].T.astype(jnp.bfloat16)
    wv_t = params["wv"].T.astype(jnp.bfloat16)
    wc_t = params["wc"].T.astype(jnp.bfloat16)
    bq = (params["bq"] * scale).reshape(1, C).astype(jnp.float32)
    bk = params["bk"].reshape(1, C).astype(jnp.float32)
    bv = params["bv"].reshape(1, C).astype(jnp.float32)
    bc = params["bc"].reshape(1, Cout).astype(jnp.float32)

    kern = functools.partial(_attnpool_kernel, num_heads=num_heads)
    const2d = lambda b: (0, 0)

    out_tok = pl.pallas_call(
        kern,
        out_shape=jax.ShapeDtypeStruct((B, L, Cout), jnp.float32),
        grid=(B,),
        in_specs=[
            pl.BlockSpec((1, C, HW), lambda b: (b, 0, 0)),   # x (one image)
            pl.BlockSpec((L, C), const2d),                   # pos embedding
            pl.BlockSpec((C, C), const2d),                   # wq (scaled)
            pl.BlockSpec((C, C), const2d),                   # wk
            pl.BlockSpec((C, C), const2d),                   # wv
            pl.BlockSpec((C, Cout), const2d),                # wc
            pl.BlockSpec((1, C), const2d),                   # bq (scaled)
            pl.BlockSpec((1, C), const2d),                   # bk
            pl.BlockSpec((1, C), const2d),                   # bv
            pl.BlockSpec((1, Cout), const2d),                # bc
        ],
        out_specs=pl.BlockSpec((1, L, Cout), lambda b: (b, 0, 0)),
        compiler_params=pltpu.CompilerParams(
            dimension_semantics=("parallel",),               # >=2 steps: both v7x TCs
            vmem_limit_bytes=32 * 1024 * 1024),
    )(x_tok, pos_bf, wq_t, wk_t, wv_t, wc_t, bq, bk, bv, bc)

    global_feat = out_tok[:, 0, :]                           # (B, Cout)
    # Restore the module's NCHW feature-map convention (boundary-only slice +
    # transpose; the kernel stores stay lane-dense with Cout on the lane axis).
    feature_map = out_tok[:, 1:, :].transpose(0, 2, 1).reshape(B, Cout, H, W)
    return global_feat, feature_map


# ------------------------------- Parameters ---------------------------------- #

def init_params(key, spacial_dim, embed_dim, output_dim, num_heads):
    del num_heads
    ks = jax.random.split(key, 9)
    s = 1.0 / math.sqrt(embed_dim)
    u = lambda k, shape: jax.random.uniform(k, shape, jnp.float32, -s, s)
    return dict(
        pos=jax.random.normal(ks[0], (spacial_dim ** 2 + 1, embed_dim),
                              jnp.float32) * s,
        wq=u(ks[1], (embed_dim, embed_dim)), bq=u(ks[2], (embed_dim,)),
        wk=u(ks[3], (embed_dim, embed_dim)), bk=u(ks[4], (embed_dim,)),
        wv=u(ks[5], (embed_dim, embed_dim)), bv=u(ks[6], (embed_dim,)),
        wc=u(ks[7], (output_dim, embed_dim)), bc=u(ks[8], (output_dim,)),
    )


# ------------------------------ Pure-JAX reference --------------------------- #

def ref_forward(x_nchw, params, *, num_heads, spacial_dim):
    """Faithful f32 re-implementation of AttentionPool2d.forward."""
    B, C, H, W = x_nchw.shape
    HW = H * W
    L = HW + 1
    hd = C // num_heads
    Cout = params["wc"].shape[0]

    t = x_nchw.reshape(B, C, HW).transpose(2, 0, 1)                  # (HW, B, C)
    t = jnp.concatenate([t.mean(axis=0, keepdims=True), t], axis=0)  # (L, B, C)
    pos = _build_pos_embedding(params["pos"], spacial_dim, H, W)     # (L, C)
    t = t + pos[:, None, :]

    lin = lambda a, w, b: jnp.einsum("lbc,oc->lbo", a, w) + b
    q = lin(t, params["wq"], params["bq"]) * (hd ** -0.5)
    k = lin(t, params["wk"], params["bk"])
    v = lin(t, params["wv"], params["bv"])

    split = lambda a: a.reshape(L, B, num_heads, hd).transpose(1, 2, 0, 3)
    qh, kh, vh = split(q), split(k), split(v)                        # (B,nh,L,hd)
    s = jnp.einsum("bhqd,bhkd->bhqk", qh, kh)
    p = jax.nn.softmax(s, axis=-1)
    o = jnp.einsum("bhqk,bhkd->bhqd", p, vh)                         # (B,nh,L,hd)
    o = o.transpose(2, 0, 1, 3).reshape(L, B, C)
    out = lin(o, params["wc"], params["bc"])                         # (L, B, Cout)
    out = out.transpose(1, 2, 0)                                     # (B, Cout, L)
    return out[:, :, 0], out[:, :, 1:].reshape(B, Cout, H, W)


# ----------------------------------- Main ------------------------------------ #

if __name__ == "__main__":
    key = jax.random.PRNGKey(0)
    kx, kp = jax.random.split(key)

    B, embed_dim, num_heads, spacial_dim, output_dim = 2, 64, 4, 8, 128
    H = W = spacial_dim

    x = jax.random.normal(kx, (B, embed_dim, H, W), jnp.float32)     # NCHW
    params = init_params(kp, spacial_dim, embed_dim, output_dim, num_heads)

    gf, fm = attention_pool2d(x, params, num_heads=num_heads,
                              spacial_dim=spacial_dim)
    gf = jax.block_until_ready(gf)
    fm = jax.block_until_ready(fm)
    assert gf.shape == (B, output_dim), gf.shape
    assert fm.shape == (B, output_dim, H, W), fm.shape

    gf_ref, fm_ref = ref_forward(x, params, num_heads=num_heads,
                                 spacial_dim=spacial_dim)
    gf_ref = jax.block_until_ready(gf_ref)
    fm_ref = jax.block_until_ready(fm_ref)

    # bf16 matmuls with f32 accumulation vs. f32 reference.
    assert np.allclose(np.asarray(gf), np.asarray(gf_ref), atol=2e-2, rtol=2e-2), \
        "global_feat mismatch"
    assert np.allclose(np.asarray(fm), np.asarray(fm_ref), atol=2e-2, rtol=2e-2), \
        "feature_map mismatch"

    print("KERNEL_OK")
</pallas_src>

<mosaic_0001>
module attributes {stable_mosaic.version = 11 : i64} {
  func.func @_attnpool_kernel(%arg0: i32, %arg1: memref<1x64x64xbf16, #tpu.memory_space<vmem>>, %arg2: memref<65x64xbf16, #tpu.memory_space<vmem>>, %arg3: memref<64x64xbf16, #tpu.memory_space<vmem>>, %arg4: memref<64x64xbf16, #tpu.memory_space<vmem>>, %arg5: memref<64x64xbf16, #tpu.memory_space<vmem>>, %arg6: memref<64x128xbf16, #tpu.memory_space<vmem>>, %arg7: memref<1x64xf32, #tpu.memory_space<vmem>>, %arg8: memref<1x64xf32, #tpu.memory_space<vmem>>, %arg9: memref<1x64xf32, #tpu.memory_space<vmem>>, %arg10: memref<1x128xf32, #tpu.memory_space<vmem>>, %arg11: memref<1x65x128xf32, #tpu.memory_space<vmem>>) attributes {dimension_semantics = [#tpu.dimension_semantics<parallel>], iteration_bounds = array<i64: 2>, scalar_prefetch = 0 : i64, scratch_operands = 0 : i64, tpu.core_type = #tpu.core_type<tc>, window_params = [{transform_indices = @transform_0, window_bounds = array<i64: 1, 64, 64>}, {pipeline_mode = #tpu.pipeline_mode<synchronous>, transform_indices = @transform_1, window_bounds = array<i64: 65, 64>}, {pipeline_mode = #tpu.pipeline_mode<synchronous>, transform_indices = @transform_2, window_bounds = array<i64: 64, 64>}, {pipeline_mode = #tpu.pipeline_mode<synchronous>, transform_indices = @transform_3, window_bounds = array<i64: 64, 64>}, {pipeline_mode = #tpu.pipeline_mode<synchronous>, transform_indices = @transform_4, window_bounds = array<i64: 64, 64>}, {pipeline_mode = #tpu.pipeline_mode<synchronous>, transform_indices = @transform_5, window_bounds = array<i64: 64, 128>}, {pipeline_mode = #tpu.pipeline_mode<synchronous>, transform_indices = @transform_6, window_bounds = array<i64: 1, 64>}, {pipeline_mode = #tpu.pipeline_mode<synchronous>, transform_indices = @transform_7, window_bounds = array<i64: 1, 64>}, {pipeline_mode = #tpu.pipeline_mode<synchronous>, transform_indices = @transform_8, window_bounds = array<i64: 1, 64>}, {pipeline_mode = #tpu.pipeline_mode<synchronous>, transform_indices = @transform_9, window_bounds = array<i64: 1, 128>}, {transform_indices = @transform_10, window_bounds = array<i64: 1, 65, 128>}]} {
    %c0 = arith.constant 0 : index
    %c0_0 = arith.constant 0 : index
    %c0_1 = arith.constant 0 : index
    %0 = vector.load %arg1[%c0, %c0_0, %c0_1] : memref<1x64x64xbf16, #tpu.memory_space<vmem>>, vector<1x64x64xbf16>
    %1 = vector.shape_cast %0 : vector<1x64x64xbf16> to vector<64x64xbf16>
    %2 = arith.extf %1 : vector<64x64xbf16> to vector<64x64xf32>
    %3 = tpu.transpose %2, [1, 0] : vector<64x64xf32> -> vector<64x64xf32>
    %cst = arith.constant dense<0.000000e+00> : vector<64xf32>
    %4 = vector.multi_reduction <add>, %3, %cst [0] : vector<64x64xf32> to vector<64xf32>
    %5 = vector.shape_cast %4 : vector<64xf32> to vector<1x64xf32>
    %cst_2 = arith.constant 6.400000e+01 : f32
    %6 = vector.broadcast %cst_2 : f32 to vector<1x64xf32>
    %7 = arith.divf %5, %6 : vector<1x64xf32>
    %8 = tpu.concatenate %7, %3 in 0 : vector<1x64xf32>, vector<64x64xf32> -> vector<65x64xf32>
    %c0_3 = arith.constant 0 : index
    %c0_4 = arith.constant 0 : index
    %9 = vector.load %arg2[%c0_3, %c0_4] : memref<65x64xbf16, #tpu.memory_space<vmem>>, vector<65x64xbf16>
    %10 = arith.extf %9 : vector<65x64xbf16> to vector<65x64xf32>
    %11 = arith.addf %8, %10 : vector<65x64xf32>
    %12 = arith.truncf %11 : vector<65x64xf32> to vector<65x64xbf16>
    %c0_5 = arith.constant 0 : index
    %c0_6 = arith.constant 0 : index
    %13 = vector.load %arg3[%c0_5, %c0_6] : memref<64x64xbf16, #tpu.memory_space<vmem>>, vector<64x64xbf16>
    %cst_7 = arith.constant dense<0.000000e+00> : vector<65x64xf32>
    %14 = tpu.matmul %12, %13, %cst_7 {dimension_numbers = #tpu.dot_dimension_numbers<[1], [0], [0], [1], [0, 0, 1, 1], [], []>} : vector<65x64xbf16>, vector<64x64xbf16>, vector<65x64xf32> -> vector<65x64xf32>
    %c0_8 = arith.constant 0 : index
    %c0_9 = arith.constant 0 : index
    %15 = vector.load %arg7[%c0_8, %c0_9] : memref<1x64xf32, #tpu.memory_space<vmem>>, vector<1x64xf32>
    %16 = vector.broadcast %15 : vector<1x64xf32> to vector<65x64xf32>
    %17 = arith.addf %14, %16 : vector<65x64xf32>
    %18 = arith.truncf %17 : vector<65x64xf32> to vector<65x64xbf16>
    %c0_10 = arith.constant 0 : index
    %c0_11 = arith.constant 0 : index
    %19 = vector.load %arg4[%c0_10, %c0_11] : memref<64x64xbf16, #tpu.memory_space<vmem>>, vector<64x64xbf16>
    %cst_12 = arith.constant dense<0.000000e+00> : vector<65x64xf32>
    %20 = tpu.matmul %12, %19, %cst_12 {dimension_numbers = #tpu.dot_dimension_numbers<[1], [0], [0], [1], [0, 0, 1, 1], [], []>} : vector<65x64xbf16>, vector<64x64xbf16>, vector<65x64xf32> -> vector<65x64xf32>
    %c0_13 = arith.constant 0 : index
    %c0_14 = arith.constant 0 : index
    %21 = vector.load %arg8[%c0_13, %c0_14] : memref<1x64xf32, #tpu.memory_space<vmem>>, vector<1x64xf32>
    %22 = vector.broadcast %21 : vector<1x64xf32> to vector<65x64xf32>
    %23 = arith.addf %20, %22 : vector<65x64xf32>
    %24 = arith.truncf %23 : vector<65x64xf32> to vector<65x64xbf16>
    %c0_15 = arith.constant 0 : index
    %c0_16 = arith.constant 0 : index
    %25 = vector.load %arg5[%c0_15, %c0_16] : memref<64x64xbf16, #tpu.memory_space<vmem>>, vector<64x64xbf16>
    %cst_17 = arith.constant dense<0.000000e+00> : vector<65x64xf32>
    %26 = tpu.matmul %12, %25, %cst_17 {dimension_numbers = #tpu.dot_dimension_numbers<[1], [0], [0], [1], [0, 0, 1, 1], [], []>} : vector<65x64xbf16>, vector<64x64xbf16>, vector<65x64xf32> -> vector<65x64xf32>
    %c0_18 = arith.constant 0 : index
    %c0_19 = arith.constant 0 : index
    %27 = vector.load %arg9[%c0_18, %c0_19] : memref<1x64xf32, #tpu.memory_space<vmem>>, vector<1x64xf32>
    %28 = vector.broadcast %27 : vector<1x64xf32> to vector<65x64xf32>
    %29 = arith.addf %26, %28 : vector<65x64xf32>
    %30 = arith.truncf %29 : vector<65x64xf32> to vector<65x64xbf16>
    %31 = vector.extract_strided_slice %18 {offsets = [0, 0], sizes = [65, 16], strides = [1, 1]} : vector<65x64xbf16> to vector<65x16xbf16>
    %32 = vector.extract_strided_slice %24 {offsets = [0, 0], sizes = [65, 16], strides = [1, 1]} : vector<65x64xbf16> to vector<65x16xbf16>
    %33 = vector.extract_strided_slice %30 {offsets = [0, 0], sizes = [65, 16], strides = [1, 1]} : vector<65x64xbf16> to vector<65x16xbf16>
    %cst_20 = arith.constant dense<0.000000e+00> : vector<65x65xf32>
    %34 = tpu.matmul %31, %32, %cst_20 {dimension_numbers = #tpu.dot_dimension_numbers<[1], [1], [0], [0], [0, 0, 1, 0], [], []>} : vector<65x16xbf16>, vector<65x16xbf16>, vector<65x65xf32> -> vector<65x65xf32>
    %cst_21 = arith.constant dense<0xFF800000> : vector<65xf32>
    %35 = vector.multi_reduction <maximumf>, %34, %cst_21 [1] : vector<65x65xf32> to vector<65xf32>
    %36 = vector.shape_cast %35 : vector<65xf32> to vector<65x1xf32>
    %37 = vector.broadcast %36 : vector<65x1xf32> to vector<65x65xf32>
    %38 = arith.subf %34, %37 : vector<65x65xf32>
    %39 = math.exp %38 : vector<65x65xf32>
    %cst_22 = arith.constant dense<0.000000e+00> : vector<65xf32>
    %40 = vector.multi_reduction <add>, %39, %cst_22 [1] : vector<65x65xf32> to vector<65xf32>
    %41 = vector.shape_cast %40 : vector<65xf32> to vector<65x1xf32>
    %42 = tpu.reciprocal %41 {approx = true} : vector<65x1xf32> -> vector<65x1xf32>
    %43 = vector.broadcast %42 : vector<65x1xf32> to vector<65x65xf32>
    %44 = arith.mulf %39, %43 : vector<65x65xf32>
    %45 = arith.truncf %44 : vector<65x65xf32> to vector<65x65xbf16>
    %cst_23 = arith.constant dense<0.000000e+00> : vector<65x16xf32>
    %46 = tpu.matmul %45, %33, %cst_23 {dimension_numbers = #tpu.dot_dimension_numbers<[1], [0], [0], [1], [0, 0, 1, 1], [], []>} : vector<65x65xbf16>, vector<65x16xbf16>, vector<65x16xf32> -> vector<65x16xf32>
    %47 = vector.extract_strided_slice %18 {offsets = [0, 16], sizes = [65, 16], strides = [1, 1]} : vector<65x64xbf16> to vector<65x16xbf16>
    %48 = vector.extract_strided_slice %24 {offsets = [0, 16], sizes = [65, 16], strides = [1, 1]} : vector<65x64xbf16> to vector<65x16xbf16>
    %49 = vector.extract_strided_slice %30 {offsets = [0, 16], sizes = [65, 16], strides = [1, 1]} : vector<65x64xbf16> to vector<65x16xbf16>
    %cst_24 = arith.constant dense<0.000000e+00> : vector<65x65xf32>
    %50 = tpu.matmul %47, %48, %cst_24 {dimension_numbers = #tpu.dot_dimension_numbers<[1], [1], [0], [0], [0, 0, 1, 0], [], []>} : vector<65x16xbf16>, vector<65x16xbf16>, vector<65x65xf32> -> vector<65x65xf32>
    %cst_25 = arith.constant dense<0xFF800000> : vector<65xf32>
    %51 = vector.multi_reduction <maximumf>, %50, %cst_25 [1] : vector<65x65xf32> to vector<65xf32>
    %52 = vector.shape_cast %51 : vector<65xf32> to vector<65x1xf32>
    %53 = vector.broadcast %52 : vector<65x1xf32> to vector<65x65xf32>
    %54 = arith.subf %50, %53 : vector<65x65xf32>
    %55 = math.exp %54 : vector<65x65xf32>
    %cst_26 = arith.constant dense<0.000000e+00> : vector<65xf32>
    %56 = vector.multi_reduction <add>, %55, %cst_26 [1] : vector<65x65xf32> to vector<65xf32>
    %57 = vector.shape_cast %56 : vector<65xf32> to vector<65x1xf32>
    %58 = tpu.reciprocal %57 {approx = true} : vector<65x1xf32> -> vector<65x1xf32>
    %59 = vector.broadcast %58 : vector<65x1xf32> to vector<65x65xf32>
    %60 = arith.mulf %55, %59 : vector<65x65xf32>
    %61 = arith.truncf %60 : vector<65x65xf32> to vector<65x65xbf16>
    %cst_27 = arith.constant dense<0.000000e+00> : vector<65x16xf32>
    %62 = tpu.matmul %61, %49, %cst_27 {dimension_numbers = #tpu.dot_dimension_numbers<[1], [0], [0], [1], [0, 0, 1, 1], [], []>} : vector<65x65xbf16>, vector<65x16xbf16>, vector<65x16xf32> -> vector<65x16xf32>
    %63 = vector.extract_strided_slice %18 {offsets = [0, 32], sizes = [65, 16], strides = [1, 1]} : vector<65x64xbf16> to vector<65x16xbf16>
    %64 = vector.extract_strided_slice %24 {offsets = [0, 32], sizes = [65, 16], strides = [1, 1]} : vector<65x64xbf16> to vector<65x16xbf16>
    %65 = vector.extract_strided_slice %30 {offsets = [0, 32], sizes = [65, 16], strides = [1, 1]} : vector<65x64xbf16> to vector<65x16xbf16>
    %cst_28 = arith.constant dense<0.000000e+00> : vector<65x65xf32>
    %66 = tpu.matmul %63, %64, %cst_28 {dimension_numbers = #tpu.dot_dimension_numbers<[1], [1], [0], [0], [0, 0, 1, 0], [], []>} : vector<65x16xbf16>, vector<65x16xbf16>, vector<65x65xf32> -> vector<65x65xf32>
    %cst_29 = arith.constant dense<0xFF800000> : vector<65xf32>
    %67 = vector.multi_reduction <maximumf>, %66, %cst_29 [1] : vector<65x65xf32> to vector<65xf32>
    %68 = vector.shape_cast %67 : vector<65xf32> to vector<65x1xf32>
    %69 = vector.broadcast %68 : vector<65x1xf32> to vector<65x65xf32>
    %70 = arith.subf %66, %69 : vector<65x65xf32>
    %71 = math.exp %70 : vector<65x65xf32>
    %cst_30 = arith.constant dense<0.000000e+00> : vector<65xf32>
    %72 = vector.multi_reduction <add>, %71, %cst_30 [1] : vector<65x65xf32> to vector<65xf32>
    %73 = vector.shape_cast %72 : vector<65xf32> to vector<65x1xf32>
    %74 = tpu.reciprocal %73 {approx = true} : vector<65x1xf32> -> vector<65x1xf32>
    %75 = vector.broadcast %74 : vector<65x1xf32> to vector<65x65xf32>
    %76 = arith.mulf %71, %75 : vector<65x65xf32>
    %77 = arith.truncf %76 : vector<65x65xf32> to vector<65x65xbf16>
    %cst_31 = arith.constant dense<0.000000e+00> : vector<65x16xf32>
    %78 = tpu.matmul %77, %65, %cst_31 {dimension_numbers = #tpu.dot_dimension_numbers<[1], [0], [0], [1], [0, 0, 1, 1], [], []>} : vector<65x65xbf16>, vector<65x16xbf16>, vector<65x16xf32> -> vector<65x16xf32>
    %79 = vector.extract_strided_slice %18 {offsets = [0, 48], sizes = [65, 16], strides = [1, 1]} : vector<65x64xbf16> to vector<65x16xbf16>
    %80 = vector.extract_strided_slice %24 {offsets = [0, 48], sizes = [65, 16], strides = [1, 1]} : vector<65x64xbf16> to vector<65x16xbf16>
    %81 = vector.extract_strided_slice %30 {offsets = [0, 48], sizes = [65, 16], strides = [1, 1]} : vector<65x64xbf16> to vector<65x16xbf16>
    %cst_32 = arith.constant dense<0.000000e+00> : vector<65x65xf32>
    %82 = tpu.matmul %79, %80, %cst_32 {dimension_numbers = #tpu.dot_dimension_numbers<[1], [1], [0], [0], [0, 0, 1, 0], [], []>} : vector<65x16xbf16>, vector<65x16xbf16>, vector<65x65xf32> -> vector<65x65xf32>
    %cst_33 = arith.constant dense<0xFF800000> : vector<65xf32>
    %83 = vector.multi_reduction <maximumf>, %82, %cst_33 [1] : vector<65x65xf32> to vector<65xf32>
    %84 = vector.shape_cast %83 : vector<65xf32> to vector<65x1xf32>
    %85 = vector.broadcast %84 : vector<65x1xf32> to vector<65x65xf32>
    %86 = arith.subf %82, %85 : vector<65x65xf32>
    %87 = math.exp %86 : vector<65x65xf32>
    %cst_34 = arith.constant dense<0.000000e+00> : vector<65xf32>
    %88 = vector.multi_reduction <add>, %87, %cst_34 [1] : vector<65x65xf32> to vector<65xf32>
    %89 = vector.shape_cast %88 : vector<65xf32> to vector<65x1xf32>
    %90 = tpu.reciprocal %89 {approx = true} : vector<65x1xf32> -> vector<65x1xf32>
    %91 = vector.broadcast %90 : vector<65x1xf32> to vector<65x65xf32>
    %92 = arith.mulf %87, %91 : vector<65x65xf32>
    %93 = arith.truncf %92 : vector<65x65xf32> to vector<65x65xbf16>
    %cst_35 = arith.constant dense<0.000000e+00> : vector<65x16xf32>
    %94 = tpu.matmul %93, %81, %cst_35 {dimension_numbers = #tpu.dot_dimension_numbers<[1], [0], [0], [1], [0, 0, 1, 1], [], []>} : vector<65x65xbf16>, vector<65x16xbf16>, vector<65x16xf32> -> vector<65x16xf32>
    %95 = tpu.concatenate %46, %62, %78, %94 in 1 : vector<65x16xf32>, vector<65x16xf32>, vector<65x16xf32>, vector<65x16xf32> -> vector<65x64xf32>
    %96 = arith.truncf %95 : vector<65x64xf32> to vector<65x64xbf16>
    %c0_36 = arith.constant 0 : index
    %c0_37 = arith.constant 0 : index
    %97 = vector.load %arg6[%c0_36, %c0_37] : memref<64x128xbf16, #tpu.memory_space<vmem>>, vector<64x128xbf16>
    %cst_38 = arith.constant dense<0.000000e+00> : vector<65x128xf32>
    %98 = tpu.matmul %96, %97, %cst_38 {dimension_numbers = #tpu.dot_dimension_numbers<[1], [0], [0], [1], [0, 0, 1, 1], [], []>} : vector<65x64xbf16>, vector<64x128xbf16>, vector<65x128xf32> -> vector<65x128xf32>
    %c0_39 = arith.constant 0 : index
    %c0_40 = arith.constant 0 : index
    %99 = vector.load %arg10[%c0_39, %c0_40] : memref<1x128xf32, #tpu.memory_space<vmem>>, vector<1x128xf32>
    %100 = vector.broadcast %99 : vector<1x128xf32> to vector<65x128xf32>
    %101 = arith.addf %98, %100 : vector<65x128xf32>
    %102 = vector.shape_cast %101 : vector<65x128xf32> to vector<1x65x128xf32>
    %c0_41 = arith.constant 0 : index
    %c0_42 = arith.constant 0 : index
    %c0_43 = arith.constant 0 : index
    %103 = vector.load %arg11[%c0_41, %c0_42, %c0_43] : memref<1x65x128xf32, #tpu.memory_space<vmem>>, vector<1x65x128xf32>
    tpu.vector_store %arg11[%c0_41, %c0_42, %c0_43], %102 {strides = array<i32>} : memref<1x65x128xf32, #tpu.memory_space<vmem>>, vector<1x65x128xf32>,
    return
  }
  func.func @transform_0(%arg0: i32) -> (i32, i32, i32) {
    %c0_i32 = arith.constant 0 : i32
    %c0_i32_0 = arith.constant 0 : i32
    %c0_i32_1 = arith.constant 0 : i32
    return %arg0, %c0_i32, %c0_i32_0 : i32, i32, i32
  }
  func.func @transform_1(%arg0: i32) -> (i32, i32) {
    %c0_i32 = arith.constant 0 : i32
    %c0_i32_0 = arith.constant 0 : i32
    %c0_i32_1 = arith.constant 0 : i32
    return %c0_i32, %c0_i32_0 : i32, i32
  }
  func.func @transform_2(%arg0: i32) -> (i32, i32) {
    %c0_i32 = arith.constant 0 : i32
    %c0_i32_0 = arith.constant 0 : i32
    %c0_i32_1 = arith.constant 0 : i32
    return %c0_i32, %c0_i32_0 : i32, i32
  }
  func.func @transform_3(%arg0: i32) -> (i32, i32) {
    %c0_i32 = arith.constant 0 : i32
    %c0_i32_0 = arith.constant 0 : i32
    %c0_i32_1 = arith.constant 0 : i32
    return %c0_i32, %c0_i32_0 : i32, i32
  }
  func.func @transform_4(%arg0: i32) -> (i32, i32) {
    %c0_i32 = arith.constant 0 : i32
    %c0_i32_0 = arith.constant 0 : i32
    %c0_i32_1 = arith.constant 0 : i32
    return %c0_i32, %c0_i32_0 : i32, i32
  }
  func.func @transform_5(%arg0: i32) -> (i32, i32) {
    %c0_i32 = arith.constant 0 : i32
    %c0_i32_0 = arith.constant 0 : i32
    %c0_i32_1 = arith.constant 0 : i32
    return %c0_i32, %c0_i32_0 : i32, i32
  }
  func.func @transform_6(%arg0: i32) -> (i32, i32) {
    %c0_i32 = arith.constant 0 : i32
    %c0_i32_0 = arith.constant 0 : i32
    %c0_i32_1 = arith.constant 0 : i32
    return %c0_i32, %c0_i32_0 : i32, i32
  }
  func.func @transform_7(%arg0: i32) -> (i32, i32) {
    %c0_i32 = arith.constant 0 : i32
    %c0_i32_0 = arith.constant 0 : i32
    %c0_i32_1 = arith.constant 0 : i32
    return %c0_i32, %c0_i32_0 : i32, i32
  }
  func.func @transform_8(%arg0: i32) -> (i32, i32) {
    %c0_i32 = arith.constant 0 : i32
    %c0_i32_0 = arith.constant 0 : i32
    %c0_i32_1 = arith.constant 0 : i32
    return %c0_i32, %c0_i32_0 : i32, i32
  }
  func.func @transform_9(%arg0: i32) -> (i32, i32) {
    %c0_i32 = arith.constant 0 : i32
    %c0_i32_0 = arith.constant 0 : i32
    %c0_i32_1 = arith.constant 0 : i32
    return %c0_i32, %c0_i32_0 : i32, i32
  }
  func.func @transform_10(%arg0: i32) -> (i32, i32, i32) {
    %c0_i32 = arith.constant 0 : i32
    %c0_i32_0 = arith.constant 0 : i32
    %c0_i32_1 = arith.constant 0 : i32
    return %arg0, %c0_i32, %c0_i32_0 : i32, i32, i32
  }
}

</mosaic_0001>

<llo_original>
// kernel: tpu_custom_call.1
$region0: #{tpu_custom_call.1}
  #allocation0 [shape = 'u32[]', space=smem, size = 0x4, offset = 0x4, fixed_abs, tag = 'smem constant byte address 0x4 - core index']
  #allocation1 [shape = 'u32[144,128]{1,0:T(1,128)}', space=vmem, size = 0x12000, scoped, tag = 'internal scratch']
  %s0 = inlined_call_operand.vmem [shape: bf16[2,64,64], index: 0, kind: input, shape index: {}]
  %s1 = inlined_call_operand.vmem [shape: bf16[65,64], index: 1, kind: input, shape index: {}]
  %s2 = inlined_call_operand.hbm [shape: bf16[64,64], index: 2, kind: input, shape index: {}]
  %s3 = inlined_call_operand.hbm [shape: bf16[64,64], index: 3, kind: input, shape index: {}]
  %s4 = inlined_call_operand.hbm [shape: bf16[64,64], index: 4, kind: input, shape index: {}]
  %s5 = inlined_call_operand.hbm [shape: bf16[64,128], index: 5, kind: input, shape index: {}]
  %s6 = inlined_call_operand.vmem [shape: f32[1,64], index: 6, kind: input, shape index: {}]
  %s7 = inlined_call_operand.vmem [shape: f32[1,64], index: 7, kind: input, shape index: {}]
  %s8 = inlined_call_operand.vmem [shape: f32[1,64], index: 8, kind: input, shape index: {}]
  %s9 = inlined_call_operand.vmem [shape: f32[1,128], index: 9, kind: input, shape index: {}]
  %s10 = inlined_call_operand.vmem [shape: f32[2,65,128], index: 10, kind: output, shape index: {}]
  %s11 = sld [smem:[#allocation0]]
  $region89: #{tpu_custom_call.1} parent=0
    _
  %s13 = ssub.s32 1, %s11
  %s14 = scalar_select 0, %s13, %s11
  $region1: #{tpu_custom_call.1} parent=0
    #allocation2 [shape = 'u8[16384]{0}', space=vmem, size = 0x4000, scoped, tag = 'input window, operand 2, single buffered']
    #allocation3 [shape = 's32[2]{0}', space=sflag, size = 0x8, scoped, tag = 'scoped memory for tpu_custom_call.1']
    #allocation4 [shape = 'u8[16384]{0}', space=vmem, size = 0x4000, scoped, tag = 'input window, operand 3, single buffered']
    #allocation5 [shape = 's32[1]{0}', space=sflag, size = 0x4, scoped, tag = 'scoped memory for tpu_custom_call.1']
    #allocation6 [shape = 'u8[16384]{0}', space=vmem, size = 0x4000, scoped, tag = 'input window, operand 4, single buffered']
    #allocation7 [shape = 'u8[16384]{0}', space=vmem, size = 0x4000, scoped, tag = 'input window, operand 5, single buffered']
    #allocation8 [shape = 's32[1]{0}', space=sflag, size = 0x4, scoped, tag = 'scoped memory for tpu_custom_call.1']
    %15 = vsyncpa [#allocation3], 0
    %16 = vsyncpa [#allocation5], 0
    %17 = vsyncpa [#allocation8], 0
    loop: start=0, step=1, limit=4
    $region2: #{tpu_custom_call.1} parent=1 // loop_pre_header
      _
    $region3: #{tpu_custom_call.1} parent=1 // loop_header
      %s19 = sphi 0, %s23
      %p20 = scmp.ge.s32.totalorder %s19, 4
      %s29 = sphi 0, %s31
      %s32 = sphi 0, %s29
      %s33 = sphi 0, %s32
      %s49 = sphi 0, %s33
      %s53 = sphi 0, %s53
      %s55 = sphi 0, %s53
      %s56 = sphi 0, %s55
      %s70 = sphi 0, %s56
      %s74 = sphi 0, %s74
      %s76 = sphi 0, %s74
      %s77 = sphi 0, %s76
      %s91 = sphi 0, %s77
      %s95 = sphi 0, %s95
      %s97 = sphi 0, %s95
      %s98 = sphi 0, %s97
      %s112 = sphi 0, %s98
      %s116 = sphi 0, %s116
      %s118 = sphi 0, %s116
      %s119 = sphi 0, %s118
      %s133 = sphi 0, %s119
      %s137 = sphi 0, %s137
      %s139 = sphi 0, %s137
      %s140 = sphi 0, %s139
      %s154 = sphi 0, %s140
      %s158 = sphi 0, %s158
      %s160 = sphi 0, %s158
      %s161 = sphi 0, %s160
      %s175 = sphi 0, %s161
      %s179 = sphi 0, %s179
      %s181 = sphi 0, %s179
      %s182 = sphi 0, %s181
      %s196 = sphi 0, %s182
      %s200 = sphi 0, %s200
      %s202 = sphi 0, %s200
      %s203 = sphi 0, %s202
      %s217 = sphi 0, %s203
      %s221 = sphi 0, %s221
      %s223 = sphi 0, %s221
      %s224 = sphi 0, %s223
      %s238 = sphi 0, %s224
      %s244 = sphi 0, %s246
      %s247 = sphi 0, %s244
      %s248 = sphi 0, %s247
      %s264 = sphi 0, %s248
    $region4: #{tpu_custom_call.1} parent=1 // loop_header_branch
      %22 = sbr.rel (%p20) target = $region8
    $region5: #{tpu_custom_call.1} parent=1 // loop_body
      %s24 = ssub.s32 %s19, 1
      %s25 = ssub.s32 %s19, 2
      %s26 = sadd.s32 %s19, 1
      %s27 = ssub.s32 %s19, %s26
      %p28 = scmp.eq.s32.totalorder %s27, 0
      %s30 = sadd.s32 %s29, 1
      %s31 = scalar_select %p28, %s29, %s30
      %p34 = pneg %p28
      %p35 = scmp.eq.s32.totalorder %s19, 1
      %p36 = por %p34, %p35
      %p37 = scmp.ne.s32.totalorder %s29, %s32
      %p38 = scmp.eq.s32.totalorder %s19, 0
      %p39 = por %p37, %p38
      %p40 = scmp.ne.s32.totalorder %s29, %s32
      %p41 = scmp.eq.s32.totalorder %s24, 1
      %p42 = por %p40, %p41
      %p43 = scmp.ne.s32.totalorder %s32, %s33
      %p44 = scmp.eq.s32.totalorder %s24, 0
      %p45 = por %p43, %p44
      %p46 = scmp.ne.s32.totalorder %s32, %s33
      %p47 = scmp.eq.s32.totalorder %s25, 1
      %p48 = por %p46, %p47
      %p50 = scmp.ne.s32.totalorder %s33, %s49
      %p51 = scmp.eq.s32.totalorder %s25, 0
      %p52 = por %p50, %p51
      %s54 = sadd.s32 %s53, 1
      %p57 = scmp.eq.s32.totalorder %s19, 1
      %p58 = scmp.ne.s32.totalorder %s53, %s55
      %p59 = scmp.eq.s32.totalorder %s19, 0
      %p60 = por %p58, %p59
      %p61 = scmp.ne.s32.totalorder %s53, %s55
      %p62 = scmp.eq.s32.totalorder %s24, 1
      %p63 = por %p61, %p62
      %p64 = scmp.ne.s32.totalorder %s55, %s56
      %p65 = scmp.eq.s32.totalorder %s24, 0
      %p66 = por %p64, %p65
      %p67 = scmp.ne.s32.totalorder %s55, %s56
      %p68 = scmp.eq.s32.totalorder %s25, 1
      %p69 = por %p67, %p68
      %p71 = scmp.ne.s32.totalorder %s56, %s70
      %p72 = scmp.eq.s32.totalorder %s25, 0
      %p73 = por %p71, %p72
      %s75 = sadd.s32 %s74, 1
      %p78 = scmp.eq.s32.totalorder %s19, 1
      %p79 = scmp.ne.s32.totalorder %s74, %s76
      %p80 = scmp.eq.s32.totalorder %s19, 0
      %p81 = por %p79, %p80
      %p82 = scmp.ne.s32.totalorder %s74, %s76
      %p83 = scmp.eq.s32.totalorder %s24, 1
      %p84 = por %p82, %p83
      %p85 = scmp.ne.s32.totalorder %s76, %s77
      %p86 = scmp.eq.s32.totalorder %s24, 0
      %p87 = por %p85, %p86
      %p88 = scmp.ne.s32.totalorder %s76, %s77
      %p89 = scmp.eq.s32.totalorder %s25, 1
      %p90 = por %p88, %p89
      %p92 = scmp.ne.s32.totalorder %s77, %s91
      %p93 = scmp.eq.s32.totalorder %s25, 0
      %p94 = por %p92, %p93
      %s96 = sadd.s32 %s95, 1
      %p99 = scmp.eq.s32.totalorder %s19, 1
      %p100 = scmp.ne.s32.totalorder %s95, %s97
      %p101 = scmp.eq.s32.totalorder %s19, 0
      %p102 = por %p100, %p101
      %p103 = scmp.ne.s32.totalorder %s95, %s97
      %p104 = scmp.eq.s32.totalorder %s24, 1
      %p105 = por %p103, %p104
      %p106 = scmp.ne.s32.totalorder %s97, %s98
      %p107 = scmp.eq.s32.totalorder %s24, 0
      %p108 = por %p106, %p107
      %p109 = scmp.ne.s32.totalorder %s97, %s98
      %p110 = scmp.eq.s32.totalorder %s25, 1
      %p111 = por %p109, %p110
      %p113 = scmp.ne.s32.totalorder %s98, %s112
      %p114 = scmp.eq.s32.totalorder %s25, 0
      %p115 = por %p113, %p114
      %s117 = sadd.s32 %s116, 1
      %p120 = scmp.eq.s32.totalorder %s19, 1
      %p121 = scmp.ne.s32.totalorder %s116, %s118
      %p122 = scmp.eq.s32.totalorder %s19, 0
      %p123 = por %p121, %p122
      %p124 = scmp.ne.s32.totalorder %s116, %s118
      %p125 = scmp.eq.s32.totalorder %s24, 1
      %p126 = por %p124, %p125
      %p127 = scmp.ne.s32.totalorder %s118, %s119
      %p128 = scmp.eq.s32.totalorder %s24, 0
      %p129 = por %p127, %p128
      %p130 = scmp.ne.s32.totalorder %s118, %s119
      %p131 = scmp.eq.s32.totalorder %s25, 1
      %p132 = por %p130, %p131
      %p134 = scmp.ne.s32.totalorder %s119, %s133
      %p135 = scmp.eq.s32.totalorder %s25, 0
      %p136 = por %p134, %p135
      %s138 = sadd.s32 %s137, 1
      %p141 = scmp.eq.s32.totalorder %s19, 1
      %p142 = scmp.ne.s32.totalorder %s137, %s139
      %p143 = scmp.eq.s32.totalorder %s19, 0
      %p144 = por %p142, %p143
      %p145 = scmp.ne.s32.totalorder %s137, %s139
      %p146 = scmp.eq.s32.totalorder %s24, 1
      %p147 = por %p145, %p146
      %p148 = scmp.ne.s32.totalorder %s139, %s140
      %p149 = scmp.eq.s32.totalorder %s24, 0
      %p150 = por %p148, %p149
      %p151 = scmp.ne.s32.totalorder %s139, %s140
      %p152 = scmp.eq.s32.totalorder %s25, 1
      %p153 = por %p151, %p152
      %p155 = scmp.ne.s32.totalorder %s140, %s154
      %p156 = scmp.eq.s32.totalorder %s25, 0
      %p157 = por %p155, %p156
      %s159 = sadd.s32 %s158, 1
      %p162 = scmp.eq.s32.totalorder %s19, 1
      %p163 = scmp.ne.s32.totalorder %s158, %s160
      %p164 = scmp.eq.s32.totalorder %s19, 0
      %p165 = por %p163, %p164
      %p166 = scmp.ne.s32.totalorder %s158, %s160
      %p167 = scmp.eq.s32.totalorder %s24, 1
      %p168 = por %p166, %p167
      %p169 = scmp.ne.s32.totalorder %s160, %s161
      %p170 = scmp.eq.s32.totalorder %s24, 0
      %p171 = por %p169, %p170
      %p172 = scmp.ne.s32.totalorder %s160, %s161
      %p173 = scmp.eq.s32.totalorder %s25, 1
      %p174 = por %p172, %p173
      %p176 = scmp.ne.s32.totalorder %s161, %s175
      %p177 = scmp.eq.s32.totalorder %s25, 0
      %p178 = por %p176, %p177
      %s180 = sadd.s32 %s179, 1
      %p183 = scmp.eq.s32.totalorder %s19, 1
      %p184 = scmp.ne.s32.totalorder %s179, %s181
      %p185 = scmp.eq.s32.totalorder %s19, 0
      %p186 = por %p184, %p185
      %p187 = scmp.ne.s32.totalorder %s179, %s181
      %p188 = scmp.eq.s32.totalorder %s24, 1
      %p189 = por %p187, %p188
      %p190 = scmp.ne.s32.totalorder %s181, %s182
      %p191 = scmp.eq.s32.totalorder %s24, 0
      %p192 = por %p190, %p191
      %p193 = scmp.ne.s32.totalorder %s181, %s182
      %p194 = scmp.eq.s32.totalorder %s25, 1
      %p195 = por %p193, %p194
      %p197 = scmp.ne.s32.totalorder %s182, %s196
      %p198 = scmp.eq.s32.totalorder %s25, 0
      %p199 = por %p197, %p198
      %s201 = sadd.s32 %s200, 1
      %p204 = scmp.eq.s32.totalorder %s19, 1
      %p205 = scmp.ne.s32.totalorder %s200, %s202
      %p206 = scmp.eq.s32.totalorder %s19, 0
      %p207 = por %p205, %p206
      %p208 = scmp.ne.s32.totalorder %s200, %s202
      %p209 = scmp.eq.s32.totalorder %s24, 1
      %p210 = por %p208, %p209
      %p211 = scmp.ne.s32.totalorder %s202, %s203
      %p212 = scmp.eq.s32.totalorder %s24, 0
      %p213 = por %p211, %p212
      %p214 = scmp.ne.s32.totalorder %s202, %s203
      %p215 = scmp.eq.s32.totalorder %s25, 1
      %p216 = por %p214, %p215
      %p218 = scmp.ne.s32.totalorder %s203, %s217
      %p219 = scmp.eq.s32.totalorder %s25, 0
      %p220 = por %p218, %p219
      %s222 = sadd.s32 %s221, 1
      %p225 = scmp.eq.s32.totalorder %s19, 1
      %p226 = scmp.ne.s32.totalorder %s221, %s223
      %p227 = scmp.eq.s32.totalorder %s19, 0
      %p228 = por %p226, %p227
      %p229 = scmp.ne.s32.totalorder %s221, %s223
      %p230 = scmp.eq.s32.totalorder %s24, 1
      %p231 = por %p229, %p230
      %p232 = scmp.ne.s32.totalorder %s223, %s224
      %p233 = scmp.eq.s32.totalorder %s24, 0
      %p234 = por %p232, %p233
      %p235 = scmp.ne.s32.totalorder %s223, %s224
      %p236 = scmp.eq.s32.totalorder %s25, 1
      %p237 = por %p235, %p236
      %p239 = scmp.ne.s32.totalorder %s224, %s238
      %p240 = scmp.eq.s32.totalorder %s25, 0
      %p241 = por %p239, %p240
      %s242 = ssub.s32 %s19, %s26
      %p243 = scmp.eq.s32.totalorder %s242, 0
      %s245 = sadd.s32 %s244, 1
      %s246 = scalar_select %p243, %s244, %s245
      %p249 = pneg %p243
      %p250 = scmp.eq.s32.totalorder %s19, 1
      %p251 = por %p249, %p250
      %p252 = scmp.ne.s32.totalorder %s244, %s247
      %p253 = scmp.eq.s32.totalorder %s19, 0
      %p254 = por %p252, %p253
      %p255 = scmp.ne.s32.totalorder %s244, %s247
      %p256 = scmp.eq.s32.totalorder %s24, 1
      %p257 = por %p255, %p256
      %p258 = scmp.ne.s32.totalorder %s247, %s248
      %p259 = scmp.eq.s32.totalorder %s24, 0
      %p260 = por %p258, %p259
      %p261 = scmp.ne.s32.totalorder %s247, %s248
      %p262 = scmp.eq.s32.totalorder %s25, 1
      %p263 = por %p261, %p262
      %p265 = scmp.ne.s32.totalorder %s248, %s264
      %p266 = scmp.eq.s32.totalorder %s25, 0
      %p267 = por %p265, %p266
      %p268 = scmp.le.s32.totalorder 1, %s19
      %p269 = scmp.lt.s32.totalorder %s19, 3
      %p270 = pnand %p268, %p269
      %p271 = pneg %p270
      // Predicated region
      $region9: #{tpu_custom_call.1} parent=5 // pred_check
        _
      $region10: #{tpu_custom_call.1} parent=5 // pred_check_branch
        %273 = sbr.rel (%p270) target = $region12
      $region11: #{tpu_custom_call.1} parent=5 // pred_region
        %s274 = ssub.s32 %s19, 1
        // Predicated region
        $region13: #{tpu_custom_call.1} parent=11 // pred_check
          %p275 = pneg %p66
        $region14: #{tpu_custom_call.1} parent=11 // pred_check_branch
          %277 = sbr.rel (%p275) target = $region16
        $region15: #{tpu_custom_call.1} parent=11 // pred_region
          _
        $region16: #{tpu_custom_call.1} parent=11 // pred_fallthru
          _
        // Predicated region
        $region17: #{tpu_custom_call.1} parent=11 // pred_check
          %p278 = pneg %p87
        $region18: #{tpu_custom_call.1} parent=11 // pred_check_branch
          %280 = sbr.rel (%p278) target = $region20
        $region19: #{tpu_custom_call.1} parent=11 // pred_region
          %s282 = ssub.s32 512, 512
          %283 = vsyncadd [#allocation3], %s282
          %s284 = sshll.u32 [#allocation2], 4
          %s285 = int_to_ptr.vmem [resolvable:$true] %s284
          %290 = dma.hbm_to_vmem [thread:$0]  %s2, 512, %s285, [#allocation3], 64, 64, 4
        $region20: #{tpu_custom_call.1} parent=11 // pred_fallthru
          _
        // Predicated region
        $region21: #{tpu_custom_call.1} parent=11 // pred_check
          %p291 = pneg %p108
        $region22: #{tpu_custom_call.1} parent=11 // pred_check_branch
          %293 = sbr.rel (%p291) target = $region24
        $region23: #{tpu_custom_call.1} parent=11 // pred_region
          %s295 = ssub.s32 512, 512
          %296 = vsyncadd [#allocation5], %s295
          %s297 = sshll.u32 [#allocation4], 4
          %s298 = int_to_ptr.vmem [resolvable:$true] %s297
          %303 = dma.hbm_to_vmem [thread:$0]  %s3, 512, %s298, [#allocation5], 64, 64, 4
        $region24: #{tpu_custom_call.1} parent=11 // pred_fallthru
          _
        // Predicated region
        $region25: #{tpu_custom_call.1} parent=11 // pred_check
          %p304 = pneg %p129
        $region26: #{tpu_custom_call.1} parent=11 // pred_check_branch
          %306 = sbr.rel (%p304) target = $region28
        $region27: #{tpu_custom_call.1} parent=11 // pred_region
          %s308 = ssub.s32 512, 512
          %309 = vsyncadd [#allocation5], %s308
          %s310 = sshll.u32 [#allocation6], 4
          %s311 = int_to_ptr.vmem [resolvable:$true] %s310
          %316 = dma.hbm_to_vmem [thread:$0]  %s4, 512, %s311, [#allocation5], 64, 64, 4
        $region28: #{tpu_custom_call.1} parent=11 // pred_fallthru
          _
        // Predicated region
        $region29: #{tpu_custom_call.1} parent=11 // pred_check
          %p317 = pneg %p150
        $region30: #{tpu_custom_call.1} parent=11 // pred_check_branch
          %319 = sbr.rel (%p317) target = $region32
        $region31: #{tpu_custom_call.1} parent=11 // pred_region
          %s321 = ssub.s32 512, 512
          %322 = vsyncadd [#allocation8], %s321
          %s323 = sshll.u32 [#allocation7], 4
          %s324 = int_to_ptr.vmem [resolvable:$true] %s323
          %329 = dma.hbm_to_vmem [thread:$0]  %s5, 512, %s324, [#allocation8], 64, 64, 4
        $region32: #{tpu_custom_call.1} parent=11 // pred_fallthru
          _
        // Predicated region
        $region33: #{tpu_custom_call.1} parent=11 // pred_check
          %p330 = pneg %p171
        $region34: #{tpu_custom_call.1} parent=11 // pred_check_branch
          %332 = sbr.rel (%p330) target = $region36
        $region35: #{tpu_custom_call.1} parent=11 // pred_region
          _
        $region36: #{tpu_custom_call.1} parent=11 // pred_fallthru
          _
        // Predicated region
        $region37: #{tpu_custom_call.1} parent=11 // pred_check
          %p333 = pneg %p192
        $region38: #{tpu_custom_call.1} parent=11 // pred_check_branch
          %335 = sbr.rel (%p333) target = $region40
        $region39: #{tpu_custom_call.1} parent=11 // pred_region
          _
        $region40: #{tpu_custom_call.1} parent=11 // pred_fallthru
          _
        // Predicated region
        $region41: #{tpu_custom_call.1} parent=11 // pred_check
          %p336 = pneg %p213
        $region42: #{tpu_custom_call.1} parent=11 // pred_check_branch
          %338 = sbr.rel (%p336) target = $region44
        $region43: #{tpu_custom_call.1} parent=11 // pred_region
          _
        $region44: #{tpu_custom_call.1} parent=11 // pred_fallthru
          _
        // Predicated region
        $region45: #{tpu_custom_call.1} parent=11 // pred_check
          %p339 = pneg %p234
        $region46: #{tpu_custom_call.1} parent=11 // pred_check_branch
          %341 = sbr.rel (%p339) target = $region48
        $region47: #{tpu_custom_call.1} parent=11 // pred_region
          _
        $region48: #{tpu_custom_call.1} parent=11 // pred_fallthru
          _
      $region12: #{tpu_custom_call.1} parent=5 // pred_fallthru
        _
      %p342 = scmp.lt.s32.totalorder %s19, 2
      // Predicated region
      $region49: #{tpu_custom_call.1} parent=5 // pred_check
        %p343 = pneg %p342
      $region50: #{tpu_custom_call.1} parent=5 // pred_check_branch
        %345 = sbr.rel (%p343) target = $region52
      $region51: #{tpu_custom_call.1} parent=5 // pred_region
        // Predicated region
        $region53: #{tpu_custom_call.1} parent=51 // pred_check
          %p346 = pneg %p39
        $region54: #{tpu_custom_call.1} parent=51 // pred_check_branch
          %348 = sbr.rel (%p346) target = $region56
        $region55: #{tpu_custom_call.1} parent=51 // pred_region
          %p349 = scmp.lt.s32.totalorder %s19, 1
          %s350 = scalar_select %p349, %s19, 1
          %s351 = smul.addr %s350, 8
          %s352 = smul.addr %s351, 4
          %s353 = scalar_lea.vmem %s0, %s352
        $region56: #{tpu_custom_call.1} parent=51 // pred_fallthru
          _
      $region52: #{tpu_custom_call.1} parent=5 // pred_fallthru
        _
      %p354 = scmp.le.s32.totalorder 1, %s19
      %p355 = scmp.lt.s32.totalorder %s19, 3
      %p356 = pnand %p354, %p355
      %p357 = pneg %p356
      // Predicated region
      $region57: #{tpu_custom_call.1} parent=5 // pred_check
        _
      $region58: #{tpu_custom_call.1} parent=5 // pred_check_branch
        %359 = sbr.rel (%p356) target = $region60
      $region59: #{tpu_custom_call.1} parent=5 // pred_region
        %s360 = ssub.s32 %s19, 1
        // Predicated region
        $region61: #{tpu_custom_call.1} parent=59 // pred_check
          %p361 = pneg %p87
        $region62: #{tpu_custom_call.1} parent=59 // pred_check_branch
          %363 = sbr.rel (%p361) target = $region64
        $region63: #{tpu_custom_call.1} parent=59 // pred_region
          %364 = dma.done [#allocation3], 512
        $region64: #{tpu_custom_call.1} parent=59 // pred_fallthru
          _
        // Predicated region
        $region65: #{tpu_custom_call.1} parent=59 // pred_check
          %p365 = pneg %p108
        $region66: #{tpu_custom_call.1} parent=59 // pred_check_branch
          %367 = sbr.rel (%p365) target = $region68
        $region67: #{tpu_custom_call.1} parent=59 // pred_region
          %368 = dma.done [#allocation5], 512
        $region68: #{tpu_custom_call.1} parent=59 // pred_fallthru
          _
        // Predicated region
        $region69: #{tpu_custom_call.1} parent=59 // pred_check
          %p369 = pneg %p129
        $region70: #{tpu_custom_call.1} parent=59 // pred_check_branch
          %371 = sbr.rel (%p369) target = $region72
        $region71: #{tpu_custom_call.1} parent=59 // pred_region
          %372 = dma.done [#allocation5], 512
        $region72: #{tpu_custom_call.1} parent=59 // pred_fallthru
          _
        // Predicated region
        $region73: #{tpu_custom_call.1} parent=59 // pred_check
          %p373 = pneg %p150
        $region74: #{tpu_custom_call.1} parent=59 // pred_check_branch
          %375 = sbr.rel (%p373) target = $region76
        $region75: #{tpu_custom_call.1} parent=59 // pred_region
          %376 = dma.done [#allocation8], 512
        $region76: #{tpu_custom_call.1} parent=59 // pred_fallthru
          _
        %p377 = scmp.lt.s32.totalorder %s24, 1
        %s378 = scalar_select %p377, %s24, 1
        %s379 = smul.addr %s378, 8
        %s380 = smul.addr %s379, 4
        %s381 = scalar_lea.vmem %s0, %s380
        %p382 = pneg %p45
        %p383 = pneg %p42
        %p384 = pneg %p66
        %p385 = pneg %p63
        %p386 = pneg %p87
        %p387 = pneg %p84
        %p388 = pneg %p108
        %p389 = pneg %p105
        %p390 = pneg %p129
        %p391 = pneg %p126
        %p392 = pneg %p150
        %p393 = pneg %p147
        %p394 = pneg %p171
        %p395 = pneg %p168
        %p396 = pneg %p192
        %p397 = pneg %p189
        %p398 = pneg %p213
        %p399 = pneg %p210
        %p400 = pneg %p234
        %p401 = pneg %p231
        %p402 = pneg %p260
        %p403 = pneg %p257
        %p404 = scmp.lt.s32.totalorder %s24, 1
        %s405 = scalar_select %p404, %s24, 1
        %s406 = smul.addr %s405, 9
        %s407 = smul.addr %s406, 8
        %s408 = scalar_lea.vmem %s10, %s407
        %p409 = scmp.lt.s32.totalorder %s24, 1
        %s410 = scalar_select %p409, %s24, 1
        %s411 = smul.addr %s410, 8
        %s412 = smul.addr %s411, 4
        %s413 = scalar_lea.vmem %s0, %s412
        %p414 = scmp.lt.s32.totalorder %s24, 1
        %s415 = scalar_select %p414, %s24, 1
        %s416 = smul.addr %s415, 9
        %s417 = smul.addr %s416, 8
        %s418 = scalar_lea.vmem %s10, %s417
        %v420 = vld [vmem:[%s413] sm:$0xf]
        %v421 = vld [vmem:[%s413 + $0x4] sm:$0xf]
        %v422 = vld [vmem:[%s413 + $0x8] sm:$0xf]
        %v423 = vld [vmem:[%s413 + $0xc] sm:$0xf]
        %v424 = vld [vmem:[%s413 + $0x10] sm:$0xf]
        %v425 = vld [vmem:[%s413 + $0x14] sm:$0xf]
        %v426 = vld [vmem:[%s413 + $0x18] sm:$0xf]
        %v427 = vld [vmem:[%s413 + $0x1c] sm:$0xf]
        %v428 = vunpack.c.l.bf16 %v420
        %v429 = vunpack.c.l.bf16 %v421
        %v430 = vunpack.c.l.bf16 %v422
        %v431 = vunpack.c.l.bf16 %v423
        %v432 = vunpack.c.l.bf16 %v424
        %v433 = vunpack.c.l.bf16 %v425
        %v434 = vunpack.c.l.bf16 %v426
        %v435 = vunpack.c.l.bf16 %v427
        %436 = vxpose.xlu0.b32.start [1/16] %v428, 128
        %437 = vxpose.xlu0.b32.cont [2/16] %v429, 128
        %438 = vxpose.xlu0.b32.cont [3/16] %v430, 128
        %439 = vxpose.xlu0.b32.cont [4/16] %v431, 128
        %440 = vxpose.xlu0.b32.cont [5/16] %v432, 128
        %441 = vxpose.xlu0.b32.cont [6/16] %v433, 128
        %442 = vxpose.xlu0.b32.cont [7/16] %v434, 128
        %443 = vxpose.xlu0.b32.cont [8/16] %v435, 128
        %444 = vxpose.xlu0.b32.cont [9/16] 0.0, 128
        %445 = vxpose.xlu0.b32.cont [10/16] 0.0, 128
        %446 = vxpose.xlu0.b32.cont [11/16] 0.0, 128
        %447 = vxpose.xlu0.b32.cont [12/16] 0.0, 128
        %448 = vxpose.xlu0.b32.cont [13/16] 0.0, 128
        %449 = vxpose.xlu0.b32.cont [14/16] 0.0, 128
        %450 = vxpose.xlu0.b32.cont [15/16] 0.0, 128
        %451 = vxpose.xlu0.b32.end [16/16] 0.0, 128
        %v452 = vpop.trf.xlu0
        %v453 = vpop.trf.xlu0
        %v454 = vpop.trf.xlu0
        %v455 = vpop.trf.xlu0
        %v456 = vpop.trf.xlu0
        %v457 = vpop.trf.xlu0
        %v458 = vpop.trf.xlu0
        %v459 = vpop.trf.xlu0
        %v460 = vpop.trf.xlu0
        %v461 = vpop.trf.xlu0
        %v462 = vpop.trf.xlu0
        %v463 = vpop.trf.xlu0
        %v464 = vpop.trf.xlu0
        %v465 = vpop.trf.xlu0
        %v466 = vpop.trf.xlu0
        %v467 = vpop.trf.xlu0
        %vm468 = vcmask 523264
        %v469 = vsel %vm468, %v452, 0.0
        %v470 = vsel %vm468, %v453, 0.0
        %v471 = vadd.f32 %v469, %v470
        %v472 = vsel %vm468, %v454, 0.0
        %v473 = vadd.f32 %v471, %v472
        %v474 = vsel %vm468, %v455, 0.0
        %v475 = vadd.f32 %v473, %v474
        %v476 = vsel %vm468, %v456, 0.0
        %v477 = vadd.f32 %v475, %v476
        %v478 = vsel %vm468, %v457, 0.0
        %v479 = vadd.f32 %v477, %v478
        %v480 = vsel %vm468, %v458, 0.0
        %v481 = vadd.f32 %v479, %v480
        %v482 = vsel %vm468, %v459, 0.0
        %v483 = vadd.f32 %v481, %v482
        %v484 = vrot.slane %v483, 4
        %v485 = vadd.f32 %v483, %v484
        %v486 = vrot.slane %v485, 2
        %v487 = vadd.f32 %v485, %v486
        %v488 = vrot.slane %v487, 1
        %v489 = vadd.f32 %v487, %v488
        %v490 = vrcp.pop 64.0
        %v491 = vmul.f32 %v489, %v490
        %vm500 = vcmask 1040384
        %v501 = vrot.slane %v452, 7
        %v502 = vrot.slane %v453, 7
        %v503 = vsel %vm500, %v501, %v502
        %v504 = vrot.slane %v454, 7
        %v505 = vsel %vm500, %v502, %v504
        %v506 = vrot.slane %v455, 7
        %v507 = vsel %vm500, %v504, %v506
        %v508 = vrot.slane %v456, 7
        %v509 = vsel %vm500, %v506, %v508
        %v510 = vrot.slane %v457, 7
        %v511 = vsel %vm500, %v508, %v510
        %v512 = vrot.slane %v458, 7
        %v513 = vsel %vm500, %v510, %v512
        %v514 = vrot.slane %v459, 7
        %v515 = vsel %vm500, %v512, %v514
        %v525 = vsel %vm500, %v491, %v501
        %v526 = vld [vmem:[%s1] sm:$0xf]
        %v527 = vld [vmem:[%s1 + $0x4] sm:$0xf]
        %v528 = vld [vmem:[%s1 + $0x8] sm:$0xf]
        %v529 = vld [vmem:[%s1 + $0xc] sm:$0xf]
        %v530 = vld [vmem:[%s1 + $0x10] sm:$0xf]
        %v531 = vld [vmem:[%s1 + $0x14] sm:$0xf]
        %v532 = vld [vmem:[%s1 + $0x18] sm:$0xf]
        %v533 = vld [vmem:[%s1 + $0x1c] sm:$0xf]
        %v534 = vld [vmem:[%s1 + $0x20] sm:$0x1]
        %v535 = vunpack.c.l.bf16 %v526
        %v536 = vunpack.c.l.bf16 %v527
        %v537 = vunpack.c.l.bf16 %v528
        %v538 = vunpack.c.l.bf16 %v529
        %v539 = vunpack.c.l.bf16 %v530
        %v540 = vunpack.c.l.bf16 %v531
        %v541 = vunpack.c.l.bf16 %v532
        %v542 = vunpack.c.l.bf16 %v533
        %v543 = vunpack.c.l.bf16 %v534
        %v544 = vadd.f32 %v525, %v535
        %v545 = vadd.f32 %v503, %v536
        %v546 = vadd.f32 %v505, %v537
        %v547 = vadd.f32 %v507, %v538
        %v548 = vadd.f32 %v509, %v539
        %v549 = vadd.f32 %v511, %v540
        %v550 = vadd.f32 %v513, %v541
        %v551 = vadd.f32 %v515, %v542
        %v552 = vadd.f32 %v514, %v543
        %v553 = vpack.c.bf16 %v545, %v544
        %v554 = vpack.c.bf16 %v547, %v546
        %v555 = vpack.c.bf16 %v549, %v548
        %v556 = vpack.c.bf16 %v551, %v550
        %v557 = vpack.c.bf16 %v552, %v552
        %v558 = vld [vmem:[#allocation2] sm:$0xf]
        %v559 = vld [vmem:[#allocation2 + $0x4] sm:$0xf]
        %v560 = vld [vmem:[#allocation2 + $0x8] sm:$0xf]
        %v561 = vld [vmem:[#allocation2 + $0xc] sm:$0xf]
        %v562 = vld [vmem:[#allocation2 + $0x10] sm:$0xf]
        %v563 = vld [vmem:[#allocation2 + $0x14] sm:$0xf]
        %v564 = vld [vmem:[#allocation2 + $0x18] sm:$0xf]
        %v565 = vld [vmem:[#allocation2 + $0x1c] sm:$0xf]
        %v566 = vld [vmem:[%s6] sm:$0x1]
        %v568 = vlaneseq
        %v569 = vshrl.u32 %v568, 7
        %v570 = vsub.s32 0, %v569
        %v571 = vrot.slane %v566, %v570
        %v581 = vunpack.c.l.b16 %v558
        %v582 = vunpack.c.l.b16 %v559
        %v583 = vunpack.c.l.b16 %v560
        %v584 = vunpack.c.l.b16 %v561
        %v585 = vunpack.c.l.b16 %v562
        %v586 = vunpack.c.l.b16 %v563
        %v587 = vunpack.c.l.b16 %v564
        %v588 = vunpack.c.l.b16 %v565
        %v589 = vpack.c.b16 %v582, %v581
        %v590 = vpack.c.b16 %v584, %v583
        %v591 = vpack.c.b16 %v586, %v585
        %v592 = vpack.c.b16 %v588, %v587
        %v598 = vsel %vm468, %v553, 0
        %v601 = vsel %vm468, %v554, 0
        %v604 = vsel %vm468, %v555, 0
        %v607 = vsel %vm468, %v556, 0
        %v610 = vsel %vm468, %v557, 0
        %612 = vmatprep.subr.bf16.mxu0 0
        %613 = vmatpush1.bf16.msra.mxu0 0
        %614 = vmatprep.subr.bf16.mxu0 0
        %615 = vmatpush1.bf16.msra.mxu0 0
        %616 = vmatprep.subr.bf16.mxu0 0
        %617 = vmatpush1.bf16.msra.mxu0 0
        %618 = vmatprep.subr.bf16.mxu0 0
        %619 = vmatpush1.bf16.msra.mxu0 0
        %620 = vmatprep.subr.bf16.mxu0 0
        %621 = vmatpush1.bf16.msra.mxu0 %v592
        %622 = vmatprep.subr.bf16.mxu0 0
        %623 = vmatpush1.bf16.msra.mxu0 %v591
        %624 = vmatprep.subr.bf16.mxu0 0
        %625 = vmatpush1.bf16.msra.mxu0 %v590
        %626 = vmatprep.subr.bf16.mxu0 0
        %627 = vmatpush1.bf16.msra.mxu0 %v589
        %628 = vmatprep.subr.bf16.mxu0 0
        %629 = vmatpush2.bf16.msra.mxu0 0
        %630 = vmatprep.subr.bf16.mxu0 0
        %631 = vmatpush2.bf16.msra.mxu0 0
        %632 = vmatprep.subr.bf16.mxu0 0
        %633 = vmatpush2.bf16.msra.mxu0 0
        %634 = vmatprep.subr.bf16.mxu0 0
        %635 = vmatpush2.bf16.msra.mxu0 0
        %636 = vmatprep.subr.bf16.mxu0 0
        %637 = vmatpush2.bf16.msra.mxu0 0
        %638 = vmatprep.subr.bf16.mxu0 0
        %639 = vmatpush2.bf16.msra.mxu0 0
        %640 = vmatprep.subr.bf16.mxu0 0
        %641 = vmatpush2.bf16.msra.mxu0 0
        %642 = vmatprep.subr.bf16.mxu0 0
        %643 = vmatpush2.bf16.msra.mxu0 0
        %644 = vmatprep.mubr.bf16.mxu0 0
        %645 = vmatmul.mubr.bf16.gmra.mxu0 %v598
        %v646 = vpop.f32.mrf.mxu0
        %v647 = vadd.f32 %v571, %v646
        %v648 = vpop.f32.mrf.mxu0
        %v649 = vpop.f32.mrf.mxu0
        %v650 = vadd.f32 %v571, %v649
        %v651 = vpop.f32.mrf.mxu0
        %652 = vmatprep.mubr.bf16.mxu0 0
        %653 = vmatmul.mubr.bf16.gmra.mxu0 %v601
        %v654 = vpop.f32.mrf.mxu0
        %v655 = vadd.f32 %v571, %v654
        %v656 = vpop.f32.mrf.mxu0
        %v657 = vpop.f32.mrf.mxu0
        %v658 = vadd.f32 %v571, %v657
        %v659 = vpop.f32.mrf.mxu0
        %660 = vmatprep.mubr.bf16.mxu0 0
        %661 = vmatmul.mubr.bf16.gmra.mxu0 %v604
        %v662 = vpop.f32.mrf.mxu0
        %v663 = vadd.f32 %v571, %v662
        %v664 = vpop.f32.mrf.mxu0
        %v665 = vpop.f32.mrf.mxu0
        %v666 = vadd.f32 %v571, %v665
        %v667 = vpop.f32.mrf.mxu0
        %668 = vmatprep.mubr.bf16.mxu0 0
        %669 = vmatmul.mubr.bf16.gmra.mxu0 %v607
        %v670 = vpop.f32.mrf.mxu0
        %v671 = vadd.f32 %v571, %v670
        %v672 = vpop.f32.mrf.mxu0
        %v673 = vpop.f32.mrf.mxu0
        %v674 = vadd.f32 %v571, %v673
        %v675 = vpop.f32.mrf.mxu0
        %676 = vmatprep.mubr.bf16.mxu0 0
        %677 = vmatmul.mubr.bf16.gmra.mxu0 %v610
        %v678 = vpop.f32.mrf.mxu0
        %v679 = vadd.f32 %v571, %v678
        %v680 = vpop.f32.mrf.mxu0
        %v681 = vpop.f32.mrf.mxu0
        %v682 = vpop.f32.mrf.mxu0
        %683 = vdwg.mxu0
        %v684 = vpack.c.bf16 %v650, %v647
        %v685 = vpack.c.bf16 %v658, %v655
        %v686 = vpack.c.bf16 %v666, %v663
        %v687 = vpack.c.bf16 %v674, %v671
        %v688 = vpack.c.bf16 %v679, %v679
        %v689 = vld [vmem:[#allocation4] sm:$0xf]
        %v690 = vld [vmem:[#allocation4 + $0x4] sm:$0xf]
        %v691 = vld [vmem:[#allocation4 + $0x8] sm:$0xf]
        %v692 = vld [vmem:[#allocation4 + $0xc] sm:$0xf]
        %v693 = vld [vmem:[#allocation4 + $0x10] sm:$0xf]
        %v694 = vld [vmem:[#allocation4 + $0x14] sm:$0xf]
        %v695 = vld [vmem:[#allocation4 + $0x18] sm:$0xf]
        %v696 = vld [vmem:[#allocation4 + $0x1c] sm:$0xf]
        %v697 = vld [vmem:[%s7] sm:$0x1]
        %v699 = vlaneseq
        %v700 = vshrl.u32 %v699, 7
        %v701 = vsub.s32 0, %v700
        %v702 = vrot.slane %v697, %v701
        %v712 = vunpack.c.l.b16 %v689
        %v713 = vunpack.c.l.b16 %v690
        %v714 = vunpack.c.l.b16 %v691
        %v715 = vunpack.c.l.b16 %v692
        %v716 = vunpack.c.l.b16 %v693
        %v717 = vunpack.c.l.b16 %v694
        %v718 = vunpack.c.l.b16 %v695
        %v719 = vunpack.c.l.b16 %v696
        %v720 = vpack.c.b16 %v713, %v712
        %v721 = vpack.c.b16 %v715, %v714
        %v722 = vpack.c.b16 %v717, %v716
        %v723 = vpack.c.b16 %v719, %v718
        %728 = vmatprep.subr.bf16.mxu0 0
        %729 = vmatpush1.bf16.msra.mxu0 0
        %730 = vmatprep.subr.bf16.mxu0 0
        %731 = vmatpush1.bf16.msra.mxu0 0
        %732 = vmatprep.subr.bf16.mxu0 0
        %733 = vmatpush1.bf16.msra.mxu0 0
        %734 = vmatprep.subr.bf16.mxu0 0
        %735 = vmatpush1.bf16.msra.mxu0 0
        %736 = vmatprep.subr.bf16.mxu0 0
        %737 = vmatpush1.bf16.msra.mxu0 %v723
        %738 = vmatprep.subr.bf16.mxu0 0
        %739 = vmatpush1.bf16.msra.mxu0 %v722
        %740 = vmatprep.subr.bf16.mxu0 0
        %741 = vmatpush1.bf16.msra.mxu0 %v721
        %742 = vmatprep.subr.bf16.mxu0 0
        %743 = vmatpush1.bf16.msra.mxu0 %v720
        %744 = vmatprep.subr.bf16.mxu0 0
        %745 = vmatpush2.bf16.msra.mxu0 0
        %746 = vmatprep.subr.bf16.mxu0 0
        %747 = vmatpush2.bf16.msra.mxu0 0
        %748 = vmatprep.subr.bf16.mxu0 0
        %749 = vmatpush2.bf16.msra.mxu0 0
        %750 = vmatprep.subr.bf16.mxu0 0
        %751 = vmatpush2.bf16.msra.mxu0 0
        %752 = vmatprep.subr.bf16.mxu0 0
        %753 = vmatpush2.bf16.msra.mxu0 0
        %754 = vmatprep.subr.bf16.mxu0 0
        %755 = vmatpush2.bf16.msra.mxu0 0
        %756 = vmatprep.subr.bf16.mxu0 0
        %757 = vmatpush2.bf16.msra.mxu0 0
        %758 = vmatprep.subr.bf16.mxu0 0
        %759 = vmatpush2.bf16.msra.mxu0 0
        %760 = vmatprep.mubr.bf16.mxu0 0
        %761 = vmatmul.mubr.bf16.gmra.mxu0 %v598
        %v762 = vpop.f32.mrf.mxu0
        %v763 = vadd.f32 %v702, %v762
        %v764 = vpop.f32.mrf.mxu0
        %v765 = vpop.f32.mrf.mxu0
        %v766 = vadd.f32 %v702, %v765
        %v767 = vpop.f32.mrf.mxu0
        %768 = vmatprep.mubr.bf16.mxu0 0
        %769 = vmatmul.mubr.bf16.gmra.mxu0 %v601
        %v770 = vpop.f32.mrf.mxu0
        %v771 = vadd.f32 %v702, %v770
        %v772 = vpop.f32.mrf.mxu0
        %v773 = vpop.f32.mrf.mxu0
        %v774 = vadd.f32 %v702, %v773
        %v775 = vpop.f32.mrf.mxu0
        %776 = vmatprep.mubr.bf16.mxu0 0
        %777 = vmatmul.mubr.bf16.gmra.mxu0 %v604
        %v778 = vpop.f32.mrf.mxu0
        %v779 = vadd.f32 %v702, %v778
        %v780 = vpop.f32.mrf.mxu0
        %v781 = vpop.f32.mrf.mxu0
        %v782 = vadd.f32 %v702, %v781
        %v783 = vpop.f32.mrf.mxu0
        %784 = vmatprep.mubr.bf16.mxu0 0
        %785 = vmatmul.mubr.bf16.gmra.mxu0 %v607
        %v786 = vpop.f32.mrf.mxu0
        %v787 = vadd.f32 %v702, %v786
        %v788 = vpop.f32.mrf.mxu0
        %v789 = vpop.f32.mrf.mxu0
        %v790 = vadd.f32 %v702, %v789
        %v791 = vpop.f32.mrf.mxu0
        %792 = vmatprep.mubr.bf16.mxu0 0
        %793 = vmatmul.mubr.bf16.gmra.mxu0 %v610
        %v794 = vpop.f32.mrf.mxu0
        %v795 = vadd.f32 %v702, %v794
        %v796 = vpop.f32.mrf.mxu0
        %v797 = vpop.f32.mrf.mxu0
        %v798 = vpop.f32.mrf.mxu0
        %799 = vdwg.mxu0
        %v800 = vpack.c.bf16 %v766, %v763
        %v801 = vpack.c.bf16 %v774, %v771
        %v802 = vpack.c.bf16 %v782, %v779
        %v803 = vpack.c.bf16 %v790, %v787
        %v804 = vpack.c.bf16 %v795, %v795
        %v805 = vld [vmem:[#allocation6] sm:$0xf]
        %v806 = vld [vmem:[#allocation6 + $0x4] sm:$0xf]
        %v807 = vld [vmem:[#allocation6 + $0x8] sm:$0xf]
        %v808 = vld [vmem:[#allocation6 + $0xc] sm:$0xf]
        %v809 = vld [vmem:[#allocation6 + $0x10] sm:$0xf]
        %v810 = vld [vmem:[#allocation6 + $0x14] sm:$0xf]
        %v811 = vld [vmem:[#allocation6 + $0x18] sm:$0xf]
        %v812 = vld [vmem:[#allocation6 + $0x1c] sm:$0xf]
        %v813 = vld [vmem:[%s8] sm:$0x1]
        %v815 = vlaneseq
        %v816 = vshrl.u32 %v815, 7
        %v817 = vsub.s32 0, %v816
        %v818 = vrot.slane %v813, %v817
        %v828 = vunpack.c.l.b16 %v805
        %v829 = vunpack.c.l.b16 %v806
        %v830 = vunpack.c.l.b16 %v807
        %v831 = vunpack.c.l.b16 %v808
        %v832 = vunpack.c.l.b16 %v809
        %v833 = vunpack.c.l.b16 %v810
        %v834 = vunpack.c.l.b16 %v811
        %v835 = vunpack.c.l.b16 %v812
        %v836 = vpack.c.b16 %v829, %v828
        %v837 = vpack.c.b16 %v831, %v830
        %v838 = vpack.c.b16 %v833, %v832
        %v839 = vpack.c.b16 %v835, %v834
        %844 = vmatprep.subr.bf16.mxu0 0
        %845 = vmatpush1.bf16.msra.mxu0 0
        %846 = vmatprep.subr.bf16.mxu0 0
        %847 = vmatpush1.bf16.msra.mxu0 0
        %848 = vmatprep.subr.bf16.mxu0 0
        %849 = vmatpush1.bf16.msra.mxu0 0
        %850 = vmatprep.subr.bf16.mxu0 0
        %851 = vmatpush1.bf16.msra.mxu0 0
        %852 = vmatprep.subr.bf16.mxu0 0
        %853 = vmatpush1.bf16.msra.mxu0 %v839
        %854 = vmatprep.subr.bf16.mxu0 0
        %855 = vmatpush1.bf16.msra.mxu0 %v838
        %856 = vmatprep.subr.bf16.mxu0 0
        %857 = vmatpush1.bf16.msra.mxu0 %v837
        %858 = vmatprep.subr.bf16.mxu0 0
        %859 = vmatpush1.bf16.msra.mxu0 %v836
        %860 = vmatprep.subr.bf16.mxu0 0
        %861 = vmatpush2.bf16.msra.mxu0 0
        %862 = vmatprep.subr.bf16.mxu0 0
        %863 = vmatpush2.bf16.msra.mxu0 0
        %864 = vmatprep.subr.bf16.mxu0 0
        %865 = vmatpush2.bf16.msra.mxu0 0
        %866 = vmatprep.subr.bf16.mxu0 0
        %867 = vmatpush2.bf16.msra.mxu0 0
        %868 = vmatprep.subr.bf16.mxu0 0
        %869 = vmatpush2.bf16.msra.mxu0 0
        %870 = vmatprep.subr.bf16.mxu0 0
        %871 = vmatpush2.bf16.msra.mxu0 0
        %872 = vmatprep.subr.bf16.mxu0 0
        %873 = vmatpush2.bf16.msra.mxu0 0
        %874 = vmatprep.subr.bf16.mxu0 0
        %875 = vmatpush2.bf16.msra.mxu0 0
        %876 = vmatprep.mubr.bf16.mxu0 0
        %877 = vmatmul.mubr.bf16.gmra.mxu0 %v598
        %v878 = vpop.f32.mrf.mxu0
        %v879 = vadd.f32 %v818, %v878
        %v880 = vpop.f32.mrf.mxu0
        %v881 = vpop.f32.mrf.mxu0
        %v882 = vadd.f32 %v818, %v881
        %v883 = vpop.f32.mrf.mxu0
        %884 = vmatprep.mubr.bf16.mxu0 0
        %885 = vmatmul.mubr.bf16.gmra.mxu0 %v601
        %v886 = vpop.f32.mrf.mxu0
        %v887 = vadd.f32 %v818, %v886
        %v888 = vpop.f32.mrf.mxu0
        %v889 = vpop.f32.mrf.mxu0
        %v890 = vadd.f32 %v818, %v889
        %v891 = vpop.f32.mrf.mxu0
        %892 = vmatprep.mubr.bf16.mxu0 0
        %893 = vmatmul.mubr.bf16.gmra.mxu0 %v604
        %v894 = vpop.f32.mrf.mxu0
        %v895 = vadd.f32 %v818, %v894
        %v896 = vpop.f32.mrf.mxu0
        %v897 = vpop.f32.mrf.mxu0
        %v898 = vadd.f32 %v818, %v897
        %v899 = vpop.f32.mrf.mxu0
        %900 = vmatprep.mubr.bf16.mxu0 0
        %901 = vmatmul.mubr.bf16.gmra.mxu0 %v607
        %v902 = vpop.f32.mrf.mxu0
        %v903 = vadd.f32 %v818, %v902
        %v904 = vpop.f32.mrf.mxu0
        %v905 = vpop.f32.mrf.mxu0
        %v906 = vadd.f32 %v818, %v905
        %v907 = vpop.f32.mrf.mxu0
        %908 = vmatprep.mubr.bf16.mxu0 0
        %909 = vmatmul.mubr.bf16.gmra.mxu0 %v610
        %v910 = vpop.f32.mrf.mxu0
        %v911 = vadd.f32 %v818, %v910
        %v912 = vpop.f32.mrf.mxu0
        %v913 = vpop.f32.mrf.mxu0
        %v914 = vpop.f32.mrf.mxu0
        %915 = vdwg.mxu0
        %v916 = vpack.c.bf16 %v882, %v879
        %v917 = vpack.c.bf16 %v890, %v887
        %v918 = vpack.c.bf16 %v898, %v895
        %v919 = vpack.c.bf16 %v906, %v903
        %v920 = vpack.c.bf16 %v911, %v911
        %vm921 = vcmask 130048
        %v923 = vsel %vm921, %v684, 0
        %v926 = vsel %vm921, %v685, 0
        %v929 = vsel %vm921, %v686, 0
        %v932 = vsel %vm921, %v687, 0
        %v935 = vsel %vm921, %v688, 0
        %v938 = vsel %vm921, %v800, 0
        %v941 = vsel %vm921, %v801, 0
        %v944 = vsel %vm921, %v802, 0
        %v947 = vsel %vm921, %v803, 0
        %v950 = vsel %vm921, %v804, 0
        %952 = vmatprep.subr.bf16.mxu0 0
        %953 = vmatpush1.bf16.xpose.msra.mxu0 0
        %954 = vmatprep.subr.bf16.mxu0 0
        %955 = vmatpush1.bf16.xpose.msra.mxu0 0
        %956 = vmatprep.subr.bf16.mxu0 0
        %957 = vmatpush1.bf16.xpose.msra.mxu0 0
        %958 = vmatprep.subr.bf16.mxu0 0
        %959 = vmatpush1.bf16.xpose.msra.mxu0 %v950
        %960 = vmatprep.subr.bf16.mxu0 0
        %961 = vmatpush1.bf16.xpose.msra.mxu0 %v947
        %962 = vmatprep.subr.bf16.mxu0 0
        %963 = vmatpush1.bf16.xpose.msra.mxu0 %v944
        %964 = vmatprep.subr.bf16.mxu0 0
        %965 = vmatpush1.bf16.xpose.msra.mxu0 %v941
        %966 = vmatprep.subr.bf16.mxu0 0
        %967 = vmatpush1.bf16.xpose.msra.mxu0 %v938
        %968 = vmatprep.subr.bf16.mxu0 0
        %969 = vmatpush2.bf16.xpose.msra.mxu0 0
        %970 = vmatprep.subr.bf16.mxu0 0
        %971 = vmatpush2.bf16.xpose.msra.mxu0 0
        %972 = vmatprep.subr.bf16.mxu0 0
        %973 = vmatpush2.bf16.xpose.msra.mxu0 0
        %974 = vmatprep.subr.bf16.mxu0 0
        %975 = vmatpush2.bf16.xpose.msra.mxu0 0
        %976 = vmatprep.subr.bf16.mxu0 0
        %977 = vmatpush2.bf16.xpose.msra.mxu0 0
        %978 = vmatprep.subr.bf16.mxu0 0
        %979 = vmatpush2.bf16.xpose.msra.mxu0 0
        %980 = vmatprep.subr.bf16.mxu0 0
        %981 = vmatpush2.bf16.xpose.msra.mxu0 0
        %982 = vmatprep.subr.bf16.mxu0 0
        %983 = vmatpush2.bf16.xpose.msra.mxu0 0
        %984 = vmatprep.mubr.bf16.mxu0 0
        %985 = vmatmul.mubr.bf16.gmra.mxu0 %v923
        %v986 = vpop.f32.mrf.mxu0
        %v987 = vadd.f32 0.0, %v986
        %v988 = vpop.f32.mrf.mxu0
        %v989 = vpop.f32.mrf.mxu0
        %v990 = vadd.f32 0.0, %v989
        %v991 = vpop.f32.mrf.mxu0
        %992 = vmatprep.mubr.bf16.mxu0 0
        %993 = vmatmul.mubr.bf16.gmra.mxu0 %v926
        %v994 = vpop.f32.mrf.mxu0
        %v995 = vadd.f32 0.0, %v994
        %v996 = vpop.f32.mrf.mxu0
        %v997 = vpop.f32.mrf.mxu0
        %v998 = vadd.f32 0.0, %v997
        %v999 = vpop.f32.mrf.mxu0
        %1000 = vmatprep.mubr.bf16.mxu0 0
        %1001 = vmatmul.mubr.bf16.gmra.mxu0 %v929
        %v1002 = vpop.f32.mrf.mxu0
        %v1003 = vadd.f32 0.0, %v1002
        %v1004 = vpop.f32.mrf.mxu0
        %v1005 = vpop.f32.mrf.mxu0
        %v1006 = vadd.f32 0.0, %v1005
        %v1007 = vpop.f32.mrf.mxu0
        %1008 = vmatprep.mubr.bf16.mxu0 0
        %1009 = vmatmul.mubr.bf16.gmra.mxu0 %v932
        %v1010 = vpop.f32.mrf.mxu0
        %v1011 = vadd.f32 0.0, %v1010
        %v1012 = vpop.f32.mrf.mxu0
        %v1013 = vpop.f32.mrf.mxu0
        %v1014 = vadd.f32 0.0, %v1013
        %v1015 = vpop.f32.mrf.mxu0
        %1016 = vmatprep.mubr.bf16.mxu0 0
        %1017 = vmatmul.mubr.bf16.gmra.mxu0 %v935
        %v1018 = vpop.f32.mrf.mxu0
        %v1019 = vadd.f32 0.0, %v1018
        %v1020 = vpop.f32.mrf.mxu0
        %v1021 = vpop.f32.mrf.mxu0
        %v1022 = vpop.f32.mrf.mxu0
        %1023 = vdwg.mxu0
        %vm1024 = vcmask 531456
        %v1025 = vsel %vm1024, %v987, -inf
        %1026 = vmax.xlane.f32.xlu0 %v1025
        %v1027 = vpop.xlane.xlu0 %1026
        %v1028 = vsel %vm1024, %v990, -inf
        %1029 = vmax.xlane.f32.xlu0 %v1028
        %v1030 = vpop.xlane.xlu0 %1029
        %v1031 = vsel %vm1024, %v995, -inf
        %1032 = vmax.xlane.f32.xlu0 %v1031
        %v1033 = vpop.xlane.xlu0 %1032
        %v1034 = vsel %vm1024, %v998, -inf
        %1035 = vmax.xlane.f32.xlu0 %v1034
        %v1036 = vpop.xlane.xlu0 %1035
        %v1037 = vsel %vm1024, %v1003, -inf
        %1038 = vmax.xlane.f32.xlu0 %v1037
        %v1039 = vpop.xlane.xlu0 %1038
        %v1040 = vsel %vm1024, %v1006, -inf
        %1041 = vmax.xlane.f32.xlu0 %v1040
        %v1042 = vpop.xlane.xlu0 %1041
        %v1043 = vsel %vm1024, %v1011, -inf
        %1044 = vmax.xlane.f32.xlu0 %v1043
        %v1045 = vpop.xlane.xlu0 %1044
        %v1046 = vsel %vm1024, %v1014, -inf
        %1047 = vmax.xlane.f32.xlu0 %v1046
        %v1048 = vpop.xlane.xlu0 %1047
        %vm1049 = vcmask 524288
        %v1050 = vsel %vm1049, %v1019, -inf
        %1051 = vmax.xlane.f32.xlu0 %v1050
        %v1052 = vpop.xlane.xlu0 %1051
        %v1053 = vsub.f32 %v987, %v1027
        %v1054 = vsub.f32 %v990, %v1030
        %v1055 = vsub.f32 %v995, %v1033
        %v1056 = vsub.f32 %v998, %v1036
        %v1057 = vsub.f32 %v1003, %v1039
        %v1058 = vsub.f32 %v1006, %v1042
        %v1059 = vsub.f32 %v1011, %v1045
        %v1060 = vsub.f32 %v1014, %v1048
        %v1061 = vsub.f32 %v1019, %v1052
        %v1062 = vmul.f32 %v1053, 1.442695
        %v1063 = vpow.pop %v1062
        %v1064 = vmul.f32 %v1054, 1.442695
        %v1065 = vpow.pop %v1064
        %v1066 = vmul.f32 %v1055, 1.442695
        %v1067 = vpow.pop %v1066
        %v1068 = vmul.f32 %v1056, 1.442695
        %v1069 = vpow.pop %v1068
        %v1070 = vmul.f32 %v1057, 1.442695
        %v1071 = vpow.pop %v1070
        %v1072 = vmul.f32 %v1058, 1.442695
        %v1073 = vpow.pop %v1072
        %v1074 = vmul.f32 %v1059, 1.442695
        %v1075 = vpow.pop %v1074
        %v1076 = vmul.f32 %v1060, 1.442695
        %v1077 = vpow.pop %v1076
        %v1078 = vmul.f32 %v1061, 1.442695
        %v1079 = vpow.pop %v1078
        %v1080 = vsel %vm1024, %v1063, 0.0
        %1081 = vadd.xlane.f32.xlu0 %v1080
        %v1082 = vpop.xlane.xlu0 %1081
        %v1083 = vsel %vm1024, %v1065, 0.0
        %1084 = vadd.xlane.f32.xlu0 %v1083
        %v1085 = vpop.xlane.xlu0 %1084
        %v1086 = vsel %vm1024, %v1067, 0.0
        %1087 = vadd.xlane.f32.xlu0 %v1086
        %v1088 = vpop.xlane.xlu0 %1087
        %v1089 = vsel %vm1024, %v1069, 0.0
        %1090 = vadd.xlane.f32.xlu0 %v1089
        %v1091 = vpop.xlane.xlu0 %1090
        %v1092 = vsel %vm1024, %v1071, 0.0
        %1093 = vadd.xlane.f32.xlu0 %v1092
        %v1094 = vpop.xlane.xlu0 %1093
        %v1095 = vsel %vm1024, %v1073, 0.0
        %1096 = vadd.xlane.f32.xlu0 %v1095
        %v1097 = vpop.xlane.xlu0 %1096
        %v1098 = vsel %vm1024, %v1075, 0.0
        %1099 = vadd.xlane.f32.xlu0 %v1098
        %v1100 = vpop.xlane.xlu0 %1099
        %v1101 = vsel %vm1024, %v1077, 0.0
        %1102 = vadd.xlane.f32.xlu0 %v1101
        %v1103 = vpop.xlane.xlu0 %1102
        %v1104 = vsel %vm1049, %v1079, 0.0
        %1105 = vadd.xlane.f32.xlu0 %v1104
        %v1106 = vpop.xlane.xlu0 %1105
        %v1107 = vrcp.pop %v1082
        %v1108 = vrcp.pop %v1085
        %v1109 = vrcp.pop %v1088
        %v1110 = vrcp.pop %v1091
        %v1111 = vrcp.pop %v1094
        %v1112 = vrcp.pop %v1097
        %v1113 = vrcp.pop %v1100
        %v1114 = vrcp.pop %v1103
        %v1115 = vrcp.pop %v1106
        %v1116 = vmul.f32 %v1063, %v1107
        %v1117 = vmul.f32 %v1065, %v1108
        %v1118 = vmul.f32 %v1067, %v1109
        %v1119 = vmul.f32 %v1069, %v1110
        %v1120 = vmul.f32 %v1071, %v1111
        %v1121 = vmul.f32 %v1073, %v1112
        %v1122 = vmul.f32 %v1075, %v1113
        %v1123 = vmul.f32 %v1077, %v1114
        %v1124 = vmul.f32 %v1079, %v1115
        %v1125 = vpack.c.bf16 %v1117, %v1116
        %v1126 = vpack.c.bf16 %v1119, %v1118
        %v1127 = vpack.c.bf16 %v1121, %v1120
        %v1128 = vpack.c.bf16 %v1123, %v1122
        %v1129 = vpack.c.bf16 %v1124, %v1124
        %v1131 = vsel %vm1024, %v1125, 0
        %v1134 = vsel %vm1024, %v1126, 0
        %v1137 = vsel %vm1024, %v1127, 0
        %v1140 = vsel %vm1024, %v1128, 0
        %v1143 = vsel %vm1024, %v1129, 0
        %v1145 = vsel 0, 4294967295, 65535
        %v1146 = vsel %vm500, %v1145, 0
        %v1148 = vand.u32 %v920, %v1146
        %1150 = vmatprep.subr.bf16.mxu0 0
        %1151 = vmatpush1.bf16.msra.mxu0 0
        %1152 = vmatprep.subr.bf16.mxu0 0
        %1153 = vmatpush1.bf16.msra.mxu0 0
        %1154 = vmatprep.subr.bf16.mxu0 0
        %1155 = vmatpush1.bf16.msra.mxu0 0
        %1156 = vmatprep.subr.bf16.mxu0 0
        %1157 = vmatpush1.bf16.msra.mxu0 %v1148
        %1158 = vmatprep.subr.bf16.mxu0 0
        %1159 = vmatpush1.bf16.msra.mxu0 %v919
        %1160 = vmatprep.subr.bf16.mxu0 0
        %1161 = vmatpush1.bf16.msra.mxu0 %v918
        %1162 = vmatprep.subr.bf16.mxu0 0
        %1163 = vmatpush1.bf16.msra.mxu0 %v917
        %1164 = vmatprep.subr.bf16.mxu0 0
        %1165 = vmatpush1.bf16.msra.mxu0 %v916
        %1166 = vmatprep.subr.bf16.mxu0 0
        %1167 = vmatpush2.bf16.msra.mxu0 0
        %1168 = vmatprep.subr.bf16.mxu0 0
        %1169 = vmatpush2.bf16.msra.mxu0 0
        %1170 = vmatprep.subr.bf16.mxu0 0
        %1171 = vmatpush2.bf16.msra.mxu0 0
        %1172 = vmatprep.subr.bf16.mxu0 0
        %1173 = vmatpush2.bf16.msra.mxu0 0
        %1174 = vmatprep.subr.bf16.mxu0 0
        %1175 = vmatpush2.bf16.msra.mxu0 0
        %1176 = vmatprep.subr.bf16.mxu0 0
        %1177 = vmatpush2.bf16.msra.mxu0 0
        %1178 = vmatprep.subr.bf16.mxu0 0
        %1179 = vmatpush2.bf16.msra.mxu0 0
        %1180 = vmatprep.subr.bf16.mxu0 0
        %1181 = vmatpush2.bf16.msra.mxu0 0
        %1182 = vmatprep.mubr.bf16.mxu0 0
        %1183 = vmatmul.mubr.bf16.gmra.mxu0 %v1131
        %v1184 = vpop.f32.mrf.mxu0
        %v1185 = vadd.f32 0.0, %v1184
        %v1186 = vpop.f32.mrf.mxu0
        %v1187 = vpop.f32.mrf.mxu0
        %v1188 = vadd.f32 0.0, %v1187
        %v1189 = vpop.f32.mrf.mxu0
        %1190 = vmatprep.mubr.bf16.mxu0 0
        %1191 = vmatmul.mubr.bf16.gmra.mxu0 %v1134
        %v1192 = vpop.f32.mrf.mxu0
        %v1193 = vadd.f32 0.0, %v1192
        %v1194 = vpop.f32.mrf.mxu0
        %v1195 = vpop.f32.mrf.mxu0
        %v1196 = vadd.f32 0.0, %v1195
        %v1197 = vpop.f32.mrf.mxu0
        %1198 = vmatprep.mubr.bf16.mxu0 0
        %1199 = vmatmul.mubr.bf16.gmra.mxu0 %v1137
        %v1200 = vpop.f32.mrf.mxu0
        %v1201 = vadd.f32 0.0, %v1200
        %v1202 = vpop.f32.mrf.mxu0
        %v1203 = vpop.f32.mrf.mxu0
        %v1204 = vadd.f32 0.0, %v1203
        %v1205 = vpop.f32.mrf.mxu0
        %1206 = vmatprep.mubr.bf16.mxu0 0
        %1207 = vmatmul.mubr.bf16.gmra.mxu0 %v1140
        %v1208 = vpop.f32.mrf.mxu0
        %v1209 = vadd.f32 0.0, %v1208
        %v1210 = vpop.f32.mrf.mxu0
        %v1211 = vpop.f32.mrf.mxu0
        %v1212 = vadd.f32 0.0, %v1211
        %v1213 = vpop.f32.mrf.mxu0
        %1214 = vmatprep.mubr.bf16.mxu0 0
        %1215 = vmatmul.mubr.bf16.gmra.mxu0 %v1143
        %v1216 = vpop.f32.mrf.mxu0
        %v1217 = vadd.f32 0.0, %v1216
        %v1218 = vpop.f32.mrf.mxu0
        %v1219 = vpop.f32.mrf.mxu0
        %v1220 = vpop.f32.mrf.mxu0
        %1221 = vdwg.mxu0
        %1227 = vrot.lane.b32.xlu0 %v684, 112
        %v1228 = vpop.permute.xlu0 %1227
        %1229 = vrot.lane.b32.xlu0 %v685, 112
        %v1230 = vpop.permute.xlu0 %1229
        %1231 = vrot.lane.b32.xlu0 %v686, 112
        %v1232 = vpop.permute.xlu0 %1231
        %1233 = vrot.lane.b32.xlu0 %v687, 112
        %v1234 = vpop.permute.xlu0 %1233
        %1235 = vrot.lane.b32.xlu0 %v688, 112
        %v1236 = vpop.permute.xlu0 %1235
        %1242 = vrot.lane.b32.xlu0 %v800, 112
        %v1243 = vpop.permute.xlu0 %1242
        %1244 = vrot.lane.b32.xlu0 %v801, 112
        %v1245 = vpop.permute.xlu0 %1244
        %1246 = vrot.lane.b32.xlu0 %v802, 112
        %v1247 = vpop.permute.xlu0 %1246
        %1248 = vrot.lane.b32.xlu0 %v803, 112
        %v1249 = vpop.permute.xlu0 %1248
        %1250 = vrot.lane.b32.xlu0 %v804, 112
        %v1251 = vpop.permute.xlu0 %1250
        %v1253 = vsel %vm921, %v1228, 0
        %v1256 = vsel %vm921, %v1230, 0
        %v1259 = vsel %vm921, %v1232, 0
        %v1262 = vsel %vm921, %v1234, 0
        %v1265 = vsel %vm921, %v1236, 0
        %v1268 = vsel %vm921, %v1243, 0
        %v1271 = vsel %vm921, %v1245, 0
        %v1274 = vsel %vm921, %v1247, 0
        %v1277 = vsel %vm921, %v1249, 0
        %v1280 = vsel %vm921, %v1251, 0
        %1282 = vmatprep.subr.bf16.mxu0 0
        %1283 = vmatpush1.bf16.xpose.msra.mxu0 0
        %1284 = vmatprep.subr.bf16.mxu0 0
        %1285 = vmatpush1.bf16.xpose.msra.mxu0 0
        %1286 = vmatprep.subr.bf16.mxu0 0
        %1287 = vmatpush1.bf16.xpose.msra.mxu0 0
        %1288 = vmatprep.subr.bf16.mxu0 0
        %1289 = vmatpush1.bf16.xpose.msra.mxu0 %v1280
        %1290 = vmatprep.subr.bf16.mxu0 0
        %1291 = vmatpush1.bf16.xpose.msra.mxu0 %v1277
        %1292 = vmatprep.subr.bf16.mxu0 0
        %1293 = vmatpush1.bf16.xpose.msra.mxu0 %v1274
        %1294 = vmatprep.subr.bf16.mxu0 0
        %1295 = vmatpush1.bf16.xpose.msra.mxu0 %v1271
        %1296 = vmatprep.subr.bf16.mxu0 0
        %1297 = vmatpush1.bf16.xpose.msra.mxu0 %v1268
        %1298 = vmatprep.subr.bf16.mxu0 0
        %1299 = vmatpush2.bf16.xpose.msra.mxu0 0
        %1300 = vmatprep.subr.bf16.mxu0 0
        %1301 = vmatpush2.bf16.xpose.msra.mxu0 0
        %1302 = vmatprep.subr.bf16.mxu0 0
        %1303 = vmatpush2.bf16.xpose.msra.mxu0 0
        %1304 = vmatprep.subr.bf16.mxu0 0
        %1305 = vmatpush2.bf16.xpose.msra.mxu0 0
        %1306 = vmatprep.subr.bf16.mxu0 0
        %1307 = vmatpush2.bf16.xpose.msra.mxu0 0
        %1308 = vmatprep.subr.bf16.mxu0 0
        %1309 = vmatpush2.bf16.xpose.msra.mxu0 0
        %1310 = vmatprep.subr.bf16.mxu0 0
        %1311 = vmatpush2.bf16.xpose.msra.mxu0 0
        %1312 = vmatprep.subr.bf16.mxu0 0
        %1313 = vmatpush2.bf16.xpose.msra.mxu0 0
        %1314 = vmatprep.mubr.bf16.mxu0 0
        %1315 = vmatmul.mubr.bf16.gmra.mxu0 %v1253
        %v1316 = vpop.f32.mrf.mxu0
        %v1317 = vadd.f32 0.0, %v1316
        %v1318 = vpop.f32.mrf.mxu0
        %v1319 = vpop.f32.mrf.mxu0
        %v1320 = vadd.f32 0.0, %v1319
        %v1321 = vpop.f32.mrf.mxu0
        %1322 = vmatprep.mubr.bf16.mxu0 0
        %1323 = vmatmul.mubr.bf16.gmra.mxu0 %v1256
        %v1324 = vpop.f32.mrf.mxu0
        %v1325 = vadd.f32 0.0, %v1324
        %v1326 = vpop.f32.mrf.mxu0
        %v1327 = vpop.f32.mrf.mxu0
        %v1328 = vadd.f32 0.0, %v1327
        %v1329 = vpop.f32.mrf.mxu0
        %1330 = vmatprep.mubr.bf16.mxu0 0
        %1331 = vmatmul.mubr.bf16.gmra.mxu0 %v1259
        %v1332 = vpop.f32.mrf.mxu0
        %v1333 = vadd.f32 0.0, %v1332
        %v1334 = vpop.f32.mrf.mxu0
        %v1335 = vpop.f32.mrf.mxu0
        %v1336 = vadd.f32 0.0, %v1335
        %v1337 = vpop.f32.mrf.mxu0
        %1338 = vmatprep.mubr.bf16.mxu0 0
        %1339 = vmatmul.mubr.bf16.gmra.mxu0 %v1262
        %v1340 = vpop.f32.mrf.mxu0
        %v1341 = vadd.f32 0.0, %v1340
        %v1342 = vpop.f32.mrf.mxu0
        %v1343 = vpop.f32.mrf.mxu0
        %v1344 = vadd.f32 0.0, %v1343
        %v1345 = vpop.f32.mrf.mxu0
        %1346 = vmatprep.mubr.bf16.mxu0 0
        %1347 = vmatmul.mubr.bf16.gmra.mxu0 %v1265
        %v1348 = vpop.f32.mrf.mxu0
        %v1349 = vadd.f32 0.0, %v1348
        %v1350 = vpop.f32.mrf.mxu0
        %v1351 = vpop.f32.mrf.mxu0
        %v1352 = vpop.f32.mrf.mxu0
        %1353 = vdwg.mxu0
        %v1354 = vsel %vm1024, %v1317, -inf
        %1355 = vmax.xlane.f32.xlu0 %v1354
        %v1356 = vpop.xlane.xlu0 %1355
        %v1357 = vsel %vm1024, %v1320, -inf
        %1358 = vmax.xlane.f32.xlu0 %v1357
        %v1359 = vpop.xlane.xlu0 %1358
        %v1360 = vsel %vm1024, %v1325, -inf
        %1361 = vmax.xlane.f32.xlu0 %v1360
        %v1362 = vpop.xlane.xlu0 %1361
        %v1363 = vsel %vm1024, %v1328, -inf
        %1364 = vmax.xlane.f32.xlu0 %v1363
        %v1365 = vpop.xlane.xlu0 %1364
        %v1366 = vsel %vm1024, %v1333, -inf
        %1367 = vmax.xlane.f32.xlu0 %v1366
        %v1368 = vpop.xlane.xlu0 %1367
        %v1369 = vsel %vm1024, %v1336, -inf
        %1370 = vmax.xlane.f32.xlu0 %v1369
        %v1371 = vpop.xlane.xlu0 %1370
        %v1372 = vsel %vm1024, %v1341, -inf
        %1373 = vmax.xlane.f32.xlu0 %v1372
        %v1374 = vpop.xlane.xlu0 %1373
        %v1375 = vsel %vm1024, %v1344, -inf
        %1376 = vmax.xlane.f32.xlu0 %v1375
        %v1377 = vpop.xlane.xlu0 %1376
        %v1378 = vsel %vm1049, %v1349, -inf
        %1379 = vmax.xlane.f32.xlu0 %v1378
        %v1380 = vpop.xlane.xlu0 %1379
        %v1381 = vsub.f32 %v1317, %v1356
        %v1382 = vsub.f32 %v1320, %v1359
        %v1383 = vsub.f32 %v1325, %v1362
        %v1384 = vsub.f32 %v1328, %v1365
        %v1385 = vsub.f32 %v1333, %v1368
        %v1386 = vsub.f32 %v1336, %v1371
        %v1387 = vsub.f32 %v1341, %v1374
        %v1388 = vsub.f32 %v1344, %v1377
        %v1389 = vsub.f32 %v1349, %v1380
        %v1390 = vmul.f32 %v1381, 1.442695
        %v1391 = vpow.pop %v1390
        %v1392 = vmul.f32 %v1382, 1.442695
        %v1393 = vpow.pop %v1392
        %v1394 = vmul.f32 %v1383, 1.442695
        %v1395 = vpow.pop %v1394
        %v1396 = vmul.f32 %v1384, 1.442695
        %v1397 = vpow.pop %v1396
        %v1398 = vmul.f32 %v1385, 1.442695
        %v1399 = vpow.pop %v1398
        %v1400 = vmul.f32 %v1386, 1.442695
        %v1401 = vpow.pop %v1400
        %v1402 = vmul.f32 %v1387, 1.442695
        %v1403 = vpow.pop %v1402
        %v1404 = vmul.f32 %v1388, 1.442695
        %v1405 = vpow.pop %v1404
        %v1406 = vmul.f32 %v1389, 1.442695
        %v1407 = vpow.pop %v1406
        %v1408 = vsel %vm1024, %v1391, 0.0
        %1409 = vadd.xlane.f32.xlu0 %v1408
        %v1410 = vpop.xlane.xlu0 %1409
        %v1411 = vsel %vm1024, %v1393, 0.0
        %1412 = vadd.xlane.f32.xlu0 %v1411
        %v1413 = vpop.xlane.xlu0 %1412
        %v1414 = vsel %vm1024, %v1395, 0.0
        %1415 = vadd.xlane.f32.xlu0 %v1414
        %v1416 = vpop.xlane.xlu0 %1415
        %v1417 = vsel %vm1024, %v1397, 0.0
        %1418 = vadd.xlane.f32.xlu0 %v1417
        %v1419 = vpop.xlane.xlu0 %1418
        %v1420 = vsel %vm1024, %v1399, 0.0
        %1421 = vadd.xlane.f32.xlu0 %v1420
        %v1422 = vpop.xlane.xlu0 %1421
        %v1423 = vsel %vm1024, %v1401, 0.0
        %1424 = vadd.xlane.f32.xlu0 %v1423
        %v1425 = vpop.xlane.xlu0 %1424
        %v1426 = vsel %vm1024, %v1403, 0.0
        %1427 = vadd.xlane.f32.xlu0 %v1426
        %v1428 = vpop.xlane.xlu0 %1427
        %v1429 = vsel %vm1024, %v1405, 0.0
        %1430 = vadd.xlane.f32.xlu0 %v1429
        %v1431 = vpop.xlane.xlu0 %1430
        %v1432 = vsel %vm1049, %v1407, 0.0
        %1433 = vadd.xlane.f32.xlu0 %v1432
        %v1434 = vpop.xlane.xlu0 %1433
        %v1435 = vrcp.pop %v1410
        %v1436 = vrcp.pop %v1413
        %v1437 = vrcp.pop %v1416
        %v1438 = vrcp.pop %v1419
        %v1439 = vrcp.pop %v1422
        %v1440 = vrcp.pop %v1425
        %v1441 = vrcp.pop %v1428
        %v1442 = vrcp.pop %v1431
        %v1443 = vrcp.pop %v1434
        %v1444 = vmul.f32 %v1391, %v1435
        %v1445 = vmul.f32 %v1393, %v1436
        %v1446 = vmul.f32 %v1395, %v1437
        %v1447 = vmul.f32 %v1397, %v1438
        %v1448 = vmul.f32 %v1399, %v1439
        %v1449 = vmul.f32 %v1401, %v1440
        %v1450 = vmul.f32 %v1403, %v1441
        %v1451 = vmul.f32 %v1405, %v1442
        %v1452 = vmul.f32 %v1407, %v1443
        %v1453 = vpack.c.bf16 %v1445, %v1444
        %v1454 = vpack.c.bf16 %v1447, %v1446
        %v1455 = vpack.c.bf16 %v1449, %v1448
        %v1456 = vpack.c.bf16 %v1451, %v1450
        %v1457 = vpack.c.bf16 %v1452, %v1452
        %1463 = vrot.lane.b32.xlu0 %v916, 112
        %v1464 = vpop.permute.xlu0 %1463
        %1465 = vrot.lane.b32.xlu0 %v917, 112
        %v1466 = vpop.permute.xlu0 %1465
        %1467 = vrot.lane.b32.xlu0 %v918, 112
        %v1468 = vpop.permute.xlu0 %1467
        %1469 = vrot.lane.b32.xlu0 %v919, 112
        %v1470 = vpop.permute.xlu0 %1469
        %1471 = vrot.lane.b32.xlu0 %v920, 112
        %v1472 = vpop.permute.xlu0 %1471
        %v1478 = vsel %vm1024, %v1453, 0
        %v1481 = vsel %vm1024, %v1454, 0
        %v1484 = vsel %vm1024, %v1455, 0
        %v1487 = vsel %vm1024, %v1456, 0
        %v1490 = vsel %vm1024, %v1457, 0
        %v1493 = vand.u32 %v1472, %v1146
        %1495 = vmatprep.subr.bf16.mxu0 0
        %1496 = vmatpush1.bf16.msra.mxu0 0
        %1497 = vmatprep.subr.bf16.mxu0 0
        %1498 = vmatpush1.bf16.msra.mxu0 0
        %1499 = vmatprep.subr.bf16.mxu0 0
        %1500 = vmatpush1.bf16.msra.mxu0 0
        %1501 = vmatprep.subr.bf16.mxu0 0
        %1502 = vmatpush1.bf16.msra.mxu0 %v1493
        %1503 = vmatprep.subr.bf16.mxu0 0
        %1504 = vmatpush1.bf16.msra.mxu0 %v1470
        %1505 = vmatprep.subr.bf16.mxu0 0
        %1506 = vmatpush1.bf16.msra.mxu0 %v1468
        %1507 = vmatprep.subr.bf16.mxu0 0
        %1508 = vmatpush1.bf16.msra.mxu0 %v1466
        %1509 = vmatprep.subr.bf16.mxu0 0
        %1510 = vmatpush1.bf16.msra.mxu0 %v1464
        %1511 = vmatprep.subr.bf16.mxu0 0
        %1512 = vmatpush2.bf16.msra.mxu0 0
        %1513 = vmatprep.subr.bf16.mxu0 0
        %1514 = vmatpush2.bf16.msra.mxu0 0
        %1515 = vmatprep.subr.bf16.mxu0 0
        %1516 = vmatpush2.bf16.msra.mxu0 0
        %1517 = vmatprep.subr.bf16.mxu0 0
        %1518 = vmatpush2.bf16.msra.mxu0 0
        %1519 = vmatprep.subr.bf16.mxu0 0
        %1520 = vmatpush2.bf16.msra.mxu0 0
        %1521 = vmatprep.subr.bf16.mxu0 0
        %1522 = vmatpush2.bf16.msra.mxu0 0
        %1523 = vmatprep.subr.bf16.mxu0 0
        %1524 = vmatpush2.bf16.msra.mxu0 0
        %1525 = vmatprep.subr.bf16.mxu0 0
        %1526 = vmatpush2.bf16.msra.mxu0 0
        %1527 = vmatprep.mubr.bf16.mxu0 0
        %1528 = vmatmul.mubr.bf16.gmra.mxu0 %v1478
        %v1529 = vpop.f32.mrf.mxu0
        %v1530 = vadd.f32 0.0, %v1529
        %v1531 = vpop.f32.mrf.mxu0
        %v1532 = vpop.f32.mrf.mxu0
        %v1533 = vadd.f32 0.0, %v1532
        %v1534 = vpop.f32.mrf.mxu0
        %1535 = vmatprep.mubr.bf16.mxu0 0
        %1536 = vmatmul.mubr.bf16.gmra.mxu0 %v1481
        %v1537 = vpop.f32.mrf.mxu0
        %v1538 = vadd.f32 0.0, %v1537
        %v1539 = vpop.f32.mrf.mxu0
        %v1540 = vpop.f32.mrf.mxu0
        %v1541 = vadd.f32 0.0, %v1540
        %v1542 = vpop.f32.mrf.mxu0
        %1543 = vmatprep.mubr.bf16.mxu0 0
        %1544 = vmatmul.mubr.bf16.gmra.mxu0 %v1484
        %v1545 = vpop.f32.mrf.mxu0
        %v1546 = vadd.f32 0.0, %v1545
        %v1547 = vpop.f32.mrf.mxu0
        %v1548 = vpop.f32.mrf.mxu0
        %v1549 = vadd.f32 0.0, %v1548
        %v1550 = vpop.f32.mrf.mxu0
        %1551 = vmatprep.mubr.bf16.mxu0 0
        %1552 = vmatmul.mubr.bf16.gmra.mxu0 %v1487
        %v1553 = vpop.f32.mrf.mxu0
        %v1554 = vadd.f32 0.0, %v1553
        %v1555 = vpop.f32.mrf.mxu0
        %v1556 = vpop.f32.mrf.mxu0
        %v1557 = vadd.f32 0.0, %v1556
        %v1558 = vpop.f32.mrf.mxu0
        %1559 = vmatprep.mubr.bf16.mxu0 0
        %1560 = vmatmul.mubr.bf16.gmra.mxu0 %v1490
        %v1561 = vpop.f32.mrf.mxu0
        %v1562 = vadd.f32 0.0, %v1561
        %v1563 = vpop.f32.mrf.mxu0
        %v1564 = vpop.f32.mrf.mxu0
        %v1565 = vpop.f32.mrf.mxu0
        %1566 = vdwg.mxu0
        %1567 = vrot.lane.b32.xlu0 %v684, 96
        %v1568 = vpop.permute.xlu0 %1567
        %1569 = vrot.lane.b32.xlu0 %v685, 96
        %v1570 = vpop.permute.xlu0 %1569
        %1571 = vrot.lane.b32.xlu0 %v686, 96
        %v1572 = vpop.permute.xlu0 %1571
        %1573 = vrot.lane.b32.xlu0 %v687, 96
        %v1574 = vpop.permute.xlu0 %1573
        %1575 = vrot.lane.b32.xlu0 %v688, 96
        %v1576 = vpop.permute.xlu0 %1575
        %1577 = vrot.lane.b32.xlu0 %v800, 96
        %v1578 = vpop.permute.xlu0 %1577
        %1579 = vrot.lane.b32.xlu0 %v801, 96
        %v1580 = vpop.permute.xlu0 %1579
        %1581 = vrot.lane.b32.xlu0 %v802, 96
        %v1582 = vpop.permute.xlu0 %1581
        %1583 = vrot.lane.b32.xlu0 %v803, 96
        %v1584 = vpop.permute.xlu0 %1583
        %1585 = vrot.lane.b32.xlu0 %v804, 96
        %v1586 = vpop.permute.xlu0 %1585
        %v1588 = vsel %vm921, %v1568, 0
        %v1591 = vsel %vm921, %v1570, 0
        %v1594 = vsel %vm921, %v1572, 0
        %v1597 = vsel %vm921, %v1574, 0
        %v1600 = vsel %vm921, %v1576, 0
        %v1603 = vsel %vm921, %v1578, 0
        %v1606 = vsel %vm921, %v1580, 0
        %v1609 = vsel %vm921, %v1582, 0
        %v1612 = vsel %vm921, %v1584, 0
        %v1615 = vsel %vm921, %v1586, 0
        %1617 = vmatprep.subr.bf16.mxu0 0
        %1618 = vmatpush1.bf16.xpose.msra.mxu0 0
        %1619 = vmatprep.subr.bf16.mxu0 0
        %1620 = vmatpush1.bf16.xpose.msra.mxu0 0
        %1621 = vmatprep.subr.bf16.mxu0 0
        %1622 = vmatpush1.bf16.xpose.msra.mxu0 0
        %1623 = vmatprep.subr.bf16.mxu0 0
        %1624 = vmatpush1.bf16.xpose.msra.mxu0 %v1615
        %1625 = vmatprep.subr.bf16.mxu0 0
        %1626 = vmatpush1.bf16.xpose.msra.mxu0 %v1612
        %1627 = vmatprep.subr.bf16.mxu0 0
        %1628 = vmatpush1.bf16.xpose.msra.mxu0 %v1609
        %1629 = vmatprep.subr.bf16.mxu0 0
        %1630 = vmatpush1.bf16.xpose.msra.mxu0 %v1606
        %1631 = vmatprep.subr.bf16.mxu0 0
        %1632 = vmatpush1.bf16.xpose.msra.mxu0 %v1603
        %1633 = vmatprep.subr.bf16.mxu0 0
        %1634 = vmatpush2.bf16.xpose.msra.mxu0 0
        %1635 = vmatprep.subr.bf16.mxu0 0
        %1636 = vmatpush2.bf16.xpose.msra.mxu0 0
        %1637 = vmatprep.subr.bf16.mxu0 0
        %1638 = vmatpush2.bf16.xpose.msra.mxu0 0
        %1639 = vmatprep.subr.bf16.mxu0 0
        %1640 = vmatpush2.bf16.xpose.msra.mxu0 0
        %1641 = vmatprep.subr.bf16.mxu0 0
        %1642 = vmatpush2.bf16.xpose.msra.mxu0 0
        %1643 = vmatprep.subr.bf16.mxu0 0
        %1644 = vmatpush2.bf16.xpose.msra.mxu0 0
        %1645 = vmatprep.subr.bf16.mxu0 0
        %1646 = vmatpush2.bf16.xpose.msra.mxu0 0
        %1647 = vmatprep.subr.bf16.mxu0 0
        %1648 = vmatpush2.bf16.xpose.msra.mxu0 0
        %1649 = vmatprep.mubr.bf16.mxu0 0
        %1650 = vmatmul.mubr.bf16.gmra.mxu0 %v1588
        %v1651 = vpop.f32.mrf.mxu0
        %v1652 = vadd.f32 0.0, %v1651
        %v1653 = vpop.f32.mrf.mxu0
        %v1654 = vpop.f32.mrf.mxu0
        %v1655 = vadd.f32 0.0, %v1654
        %v1656 = vpop.f32.mrf.mxu0
        %1657 = vmatprep.mubr.bf16.mxu0 0
        %1658 = vmatmul.mubr.bf16.gmra.mxu0 %v1591
        %v1659 = vpop.f32.mrf.mxu0
        %v1660 = vadd.f32 0.0, %v1659
        %v1661 = vpop.f32.mrf.mxu0
        %v1662 = vpop.f32.mrf.mxu0
        %v1663 = vadd.f32 0.0, %v1662
        %v1664 = vpop.f32.mrf.mxu0
        %1665 = vmatprep.mubr.bf16.mxu0 0
        %1666 = vmatmul.mubr.bf16.gmra.mxu0 %v1594
        %v1667 = vpop.f32.mrf.mxu0
        %v1668 = vadd.f32 0.0, %v1667
        %v1669 = vpop.f32.mrf.mxu0
        %v1670 = vpop.f32.mrf.mxu0
        %v1671 = vadd.f32 0.0, %v1670
        %v1672 = vpop.f32.mrf.mxu0
        %1673 = vmatprep.mubr.bf16.mxu0 0
        %1674 = vmatmul.mubr.bf16.gmra.mxu0 %v1597
        %v1675 = vpop.f32.mrf.mxu0
        %v1676 = vadd.f32 0.0, %v1675
        %v1677 = vpop.f32.mrf.mxu0
        %v1678 = vpop.f32.mrf.mxu0
        %v1679 = vadd.f32 0.0, %v1678
        %v1680 = vpop.f32.mrf.mxu0
        %1681 = vmatprep.mubr.bf16.mxu0 0
        %1682 = vmatmul.mubr.bf16.gmra.mxu0 %v1600
        %v1683 = vpop.f32.mrf.mxu0
        %v1684 = vadd.f32 0.0, %v1683
        %v1685 = vpop.f32.mrf.mxu0
        %v1686 = vpop.f32.mrf.mxu0
        %v1687 = vpop.f32.mrf.mxu0
        %1688 = vdwg.mxu0
        %v1689 = vsel %vm1024, %v1652, -inf
        %1690 = vmax.xlane.f32.xlu0 %v1689
        %v1691 = vpop.xlane.xlu0 %1690
        %v1692 = vsel %vm1024, %v1655, -inf
        %1693 = vmax.xlane.f32.xlu0 %v1692
        %v1694 = vpop.xlane.xlu0 %1693
        %v1695 = vsel %vm1024, %v1660, -inf
        %1696 = vmax.xlane.f32.xlu0 %v1695
        %v1697 = vpop.xlane.xlu0 %1696
        %v1698 = vsel %vm1024, %v1663, -inf
        %1699 = vmax.xlane.f32.xlu0 %v1698
        %v1700 = vpop.xlane.xlu0 %1699
        %v1701 = vsel %vm1024, %v1668, -inf
        %1702 = vmax.xlane.f32.xlu0 %v1701
        %v1703 = vpop.xlane.xlu0 %1702
        %v1704 = vsel %vm1024, %v1671, -inf
        %1705 = vmax.xlane.f32.xlu0 %v1704
        %v1706 = vpop.xlane.xlu0 %1705
        %v1707 = vsel %vm1024, %v1676, -inf
        %1708 = vmax.xlane.f32.xlu0 %v1707
        %v1709 = vpop.xlane.xlu0 %1708
        %v1710 = vsel %vm1024, %v1679, -inf
        %1711 = vmax.xlane.f32.xlu0 %v1710
        %v1712 = vpop.xlane.xlu0 %1711
        %v1713 = vsel %vm1049, %v1684, -inf
        %1714 = vmax.xlane.f32.xlu0 %v1713
        %v1715 = vpop.xlane.xlu0 %1714
        %v1716 = vsub.f32 %v1652, %v1691
        %v1717 = vsub.f32 %v1655, %v1694
        %v1718 = vsub.f32 %v1660, %v1697
        %v1719 = vsub.f32 %v1663, %v1700
        %v1720 = vsub.f32 %v1668, %v1703
        %v1721 = vsub.f32 %v1671, %v1706
        %v1722 = vsub.f32 %v1676, %v1709
        %v1723 = vsub.f32 %v1679, %v1712
        %v1724 = vsub.f32 %v1684, %v1715
        %v1725 = vmul.f32 %v1716, 1.442695
        %v1726 = vpow.pop %v1725
        %v1727 = vmul.f32 %v1717, 1.442695
        %v1728 = vpow.pop %v1727
        %v1729 = vmul.f32 %v1718, 1.442695
        %v1730 = vpow.pop %v1729
        %v1731 = vmul.f32 %v1719, 1.442695
        %v1732 = vpow.pop %v1731
        %v1733 = vmul.f32 %v1720, 1.442695
        %v1734 = vpow.pop %v1733
        %v1735 = vmul.f32 %v1721, 1.442695
        %v1736 = vpow.pop %v1735
        %v1737 = vmul.f32 %v1722, 1.442695
        %v1738 = vpow.pop %v1737
        %v1739 = vmul.f32 %v1723, 1.442695
        %v1740 = vpow.pop %v1739
        %v1741 = vmul.f32 %v1724, 1.442695
        %v1742 = vpow.pop %v1741
        %v1743 = vsel %vm1024, %v1726, 0.0
        %1744 = vadd.xlane.f32.xlu0 %v1743
        %v1745 = vpop.xlane.xlu0 %1744
        %v1746 = vsel %vm1024, %v1728, 0.0
        %1747 = vadd.xlane.f32.xlu0 %v1746
        %v1748 = vpop.xlane.xlu0 %1747
        %v1749 = vsel %vm1024, %v1730, 0.0
        %1750 = vadd.xlane.f32.xlu0 %v1749
        %v1751 = vpop.xlane.xlu0 %1750
        %v1752 = vsel %vm1024, %v1732, 0.0
        %1753 = vadd.xlane.f32.xlu0 %v1752
        %v1754 = vpop.xlane.xlu0 %1753
        %v1755 = vsel %vm1024, %v1734, 0.0
        %1756 = vadd.xlane.f32.xlu0 %v1755
        %v1757 = vpop.xlane.xlu0 %1756
        %v1758 = vsel %vm1024, %v1736, 0.0
        %1759 = vadd.xlane.f32.xlu0 %v1758
        %v1760 = vpop.xlane.xlu0 %1759
        %v1761 = vsel %vm1024, %v1738, 0.0
        %1762 = vadd.xlane.f32.xlu0 %v1761
        %v1763 = vpop.xlane.xlu0 %1762
        %v1764 = vsel %vm1024, %v1740, 0.0
        %1765 = vadd.xlane.f32.xlu0 %v1764
        %v1766 = vpop.xlane.xlu0 %1765
        %v1767 = vsel %vm1049, %v1742, 0.0
        %1768 = vadd.xlane.f32.xlu0 %v1767
        %v1769 = vpop.xlane.xlu0 %1768
        %v1770 = vrcp.pop %v1745
        %v1771 = vrcp.pop %v1748
        %v1772 = vrcp.pop %v1751
        %v1773 = vrcp.pop %v1754
        %v1774 = vrcp.pop %v1757
        %v1775 = vrcp.pop %v1760
        %v1776 = vrcp.pop %v1763
        %v1777 = vrcp.pop %v1766
        %v1778 = vrcp.pop %v1769
        %v1779 = vmul.f32 %v1726, %v1770
        %v1780 = vmul.f32 %v1728, %v1771
        %v1781 = vmul.f32 %v1730, %v1772
        %v1782 = vmul.f32 %v1732, %v1773
        %v1783 = vmul.f32 %v1734, %v1774
        %v1784 = vmul.f32 %v1736, %v1775
        %v1785 = vmul.f32 %v1738, %v1776
        %v1786 = vmul.f32 %v1740, %v1777
        %v1787 = vmul.f32 %v1742, %v1778
        %v1788 = vpack.c.bf16 %v1780, %v1779
        %v1789 = vpack.c.bf16 %v1782, %v1781
        %v1790 = vpack.c.bf16 %v1784, %v1783
        %v1791 = vpack.c.bf16 %v1786, %v1785
        %v1792 = vpack.c.bf16 %v1787, %v1787
        %1793 = vrot.lane.b32.xlu0 %v916, 96
        %v1794 = vpop.permute.xlu0 %1793
        %1795 = vrot.lane.b32.xlu0 %v917, 96
        %v1796 = vpop.permute.xlu0 %1795
        %1797 = vrot.lane.b32.xlu0 %v918, 96
        %v1798 = vpop.permute.xlu0 %1797
        %1799 = vrot.lane.b32.xlu0 %v919, 96
        %v1800 = vpop.permute.xlu0 %1799
        %1801 = vrot.lane.b32.xlu0 %v920, 96
        %v1802 = vpop.permute.xlu0 %1801
        %v1808 = vsel %vm1024, %v1788, 0
        %v1811 = vsel %vm1024, %v1789, 0
        %v1814 = vsel %vm1024, %v1790, 0
        %v1817 = vsel %vm1024, %v1791, 0
        %v1820 = vsel %vm1024, %v1792, 0
        %v1823 = vand.u32 %v1802, %v1146
        %1825 = vmatprep.subr.bf16.mxu0 0
        %1826 = vmatpush1.bf16.msra.mxu0 0
        %1827 = vmatprep.subr.bf16.mxu0 0
        %1828 = vmatpush1.bf16.msra.mxu0 0
        %1829 = vmatprep.subr.bf16.mxu0 0
        %1830 = vmatpush1.bf16.msra.mxu0 0
        %1831 = vmatprep.subr.bf16.mxu0 0
        %1832 = vmatpush1.bf16.msra.mxu0 %v1823
        %1833 = vmatprep.subr.bf16.mxu0 0
        %1834 = vmatpush1.bf16.msra.mxu0 %v1800
        %1835 = vmatprep.subr.bf16.mxu0 0
        %1836 = vmatpush1.bf16.msra.mxu0 %v1798
        %1837 = vmatprep.subr.bf16.mxu0 0
        %1838 = vmatpush1.bf16.msra.mxu0 %v1796
        %1839 = vmatprep.subr.bf16.mxu0 0
        %1840 = vmatpush1.bf16.msra.mxu0 %v1794
        %1841 = vmatprep.subr.bf16.mxu0 0
        %1842 = vmatpush2.bf16.msra.mxu0 0
        %1843 = vmatprep.subr.bf16.mxu0 0
        %1844 = vmatpush2.bf16.msra.mxu0 0
        %1845 = vmatprep.subr.bf16.mxu0 0
        %1846 = vmatpush2.bf16.msra.mxu0 0
        %1847 = vmatprep.subr.bf16.mxu0 0
        %1848 = vmatpush2.bf16.msra.mxu0 0
        %1849 = vmatprep.subr.bf16.mxu0 0
        %1850 = vmatpush2.bf16.msra.mxu0 0
        %1851 = vmatprep.subr.bf16.mxu0 0
        %1852 = vmatpush2.bf16.msra.mxu0 0
        %1853 = vmatprep.subr.bf16.mxu0 0
        %1854 = vmatpush2.bf16.msra.mxu0 0
        %1855 = vmatprep.subr.bf16.mxu0 0
        %1856 = vmatpush2.bf16.msra.mxu0 0
        %1857 = vmatprep.mubr.bf16.mxu0 0
        %1858 = vmatmul.mubr.bf16.gmra.mxu0 %v1808
        %v1859 = vpop.f32.mrf.mxu0
        %v1860 = vadd.f32 0.0, %v1859
        %v1861 = vpop.f32.mrf.mxu0
        %v1862 = vpop.f32.mrf.mxu0
        %v1863 = vadd.f32 0.0, %v1862
        %v1864 = vpop.f32.mrf.mxu0
        %1865 = vmatprep.mubr.bf16.mxu0 0
        %1866 = vmatmul.mubr.bf16.gmra.mxu0 %v1811
        %v1867 = vpop.f32.mrf.mxu0
        %v1868 = vadd.f32 0.0, %v1867
        %v1869 = vpop.f32.mrf.mxu0
        %v1870 = vpop.f32.mrf.mxu0
        %v1871 = vadd.f32 0.0, %v1870
        %v1872 = vpop.f32.mrf.mxu0
        %1873 = vmatprep.mubr.bf16.mxu0 0
        %1874 = vmatmul.mubr.bf16.gmra.mxu0 %v1814
        %v1875 = vpop.f32.mrf.mxu0
        %v1876 = vadd.f32 0.0, %v1875
        %v1877 = vpop.f32.mrf.mxu0
        %v1878 = vpop.f32.mrf.mxu0
        %v1879 = vadd.f32 0.0, %v1878
        %v1880 = vpop.f32.mrf.mxu0
        %1881 = vmatprep.mubr.bf16.mxu0 0
        %1882 = vmatmul.mubr.bf16.gmra.mxu0 %v1817
        %v1883 = vpop.f32.mrf.mxu0
        %v1884 = vadd.f32 0.0, %v1883
        %v1885 = vpop.f32.mrf.mxu0
        %v1886 = vpop.f32.mrf.mxu0
        %v1887 = vadd.f32 0.0, %v1886
        %v1888 = vpop.f32.mrf.mxu0
        %1889 = vmatprep.mubr.bf16.mxu0 0
        %1890 = vmatmul.mubr.bf16.gmra.mxu0 %v1820
        %v1891 = vpop.f32.mrf.mxu0
        %v1892 = vadd.f32 0.0, %v1891
        %v1893 = vpop.f32.mrf.mxu0
        %v1894 = vpop.f32.mrf.mxu0
        %v1895 = vpop.f32.mrf.mxu0
        %1896 = vdwg.mxu0
        %1897 = vrot.lane.b32.xlu0 %v684, 80
        %v1898 = vpop.permute.xlu0 %1897
        %1899 = vrot.lane.b32.xlu0 %v685, 80
        %v1900 = vpop.permute.xlu0 %1899
        %1901 = vrot.lane.b32.xlu0 %v686, 80
        %v1902 = vpop.permute.xlu0 %1901
        %1903 = vrot.lane.b32.xlu0 %v687, 80
        %v1904 = vpop.permute.xlu0 %1903
        %1905 = vrot.lane.b32.xlu0 %v688, 80
        %v1906 = vpop.permute.xlu0 %1905
        %1907 = vrot.lane.b32.xlu0 %v800, 80
        %v1908 = vpop.permute.xlu0 %1907
        %1909 = vrot.lane.b32.xlu0 %v801, 80
        %v1910 = vpop.permute.xlu0 %1909
        %1911 = vrot.lane.b32.xlu0 %v802, 80
        %v1912 = vpop.permute.xlu0 %1911
        %1913 = vrot.lane.b32.xlu0 %v803, 80
        %v1914 = vpop.permute.xlu0 %1913
        %1915 = vrot.lane.b32.xlu0 %v804, 80
        %v1916 = vpop.permute.xlu0 %1915
        %v1918 = vsel %vm921, %v1898, 0
        %v1921 = vsel %vm921, %v1900, 0
        %v1924 = vsel %vm921, %v1902, 0
        %v1927 = vsel %vm921, %v1904, 0
        %v1930 = vsel %vm921, %v1906, 0
        %v1933 = vsel %vm921, %v1908, 0
        %v1936 = vsel %vm921, %v1910, 0
        %v1939 = vsel %vm921, %v1912, 0
        %v1942 = vsel %vm921, %v1914, 0
        %v1945 = vsel %vm921, %v1916, 0
        %1947 = vmatprep.subr.bf16.mxu0 0
        %1948 = vmatpush1.bf16.xpose.msra.mxu0 0
        %1949 = vmatprep.subr.bf16.mxu0 0
        %1950 = vmatpush1.bf16.xpose.msra.mxu0 0
        %1951 = vmatprep.subr.bf16.mxu0 0
        %1952 = vmatpush1.bf16.xpose.msra.mxu0 0
        %1953 = vmatprep.subr.bf16.mxu0 0
        %1954 = vmatpush1.bf16.xpose.msra.mxu0 %v1945
        %1955 = vmatprep.subr.bf16.mxu0 0
        %1956 = vmatpush1.bf16.xpose.msra.mxu0 %v1942
        %1957 = vmatprep.subr.bf16.mxu0 0
        %1958 = vmatpush1.bf16.xpose.msra.mxu0 %v1939
        %1959 = vmatprep.subr.bf16.mxu0 0
        %1960 = vmatpush1.bf16.xpose.msra.mxu0 %v1936
        %1961 = vmatprep.subr.bf16.mxu0 0
        %1962 = vmatpush1.bf16.xpose.msra.mxu0 %v1933
        %1963 = vmatprep.subr.bf16.mxu0 0
        %1964 = vmatpush2.bf16.xpose.msra.mxu0 0
        %1965 = vmatprep.subr.bf16.mxu0 0
        %1966 = vmatpush2.bf16.xpose.msra.mxu0 0
        %1967 = vmatprep.subr.bf16.mxu0 0
        %1968 = vmatpush2.bf16.xpose.msra.mxu0 0
        %1969 = vmatprep.subr.bf16.mxu0 0
        %1970 = vmatpush2.bf16.xpose.msra.mxu0 0
        %1971 = vmatprep.subr.bf16.mxu0 0
        %1972 = vmatpush2.bf16.xpose.msra.mxu0 0
        %1973 = vmatprep.subr.bf16.mxu0 0
        %1974 = vmatpush2.bf16.xpose.msra.mxu0 0
        %1975 = vmatprep.subr.bf16.mxu0 0
        %1976 = vmatpush2.bf16.xpose.msra.mxu0 0
        %1977 = vmatprep.subr.bf16.mxu0 0
        %1978 = vmatpush2.bf16.xpose.msra.mxu0 0
        %1979 = vmatprep.mubr.bf16.mxu0 0
        %1980 = vmatmul.mubr.bf16.gmra.mxu0 %v1918
        %v1981 = vpop.f32.mrf.mxu0
        %v1982 = vadd.f32 0.0, %v1981
        %v1983 = vpop.f32.mrf.mxu0
        %v1984 = vpop.f32.mrf.mxu0
        %v1985 = vadd.f32 0.0, %v1984
        %v1986 = vpop.f32.mrf.mxu0
        %1987 = vmatprep.mubr.bf16.mxu0 0
        %1988 = vmatmul.mubr.bf16.gmra.mxu0 %v1921
        %v1989 = vpop.f32.mrf.mxu0
        %v1990 = vadd.f32 0.0, %v1989
        %v1991 = vpop.f32.mrf.mxu0
        %v1992 = vpop.f32.mrf.mxu0
        %v1993 = vadd.f32 0.0, %v1992
        %v1994 = vpop.f32.mrf.mxu0
        %1995 = vmatprep.mubr.bf16.mxu0 0
        %1996 = vmatmul.mubr.bf16.gmra.mxu0 %v1924
        %v1997 = vpop.f32.mrf.mxu0
        %v1998 = vadd.f32 0.0, %v1997
        %v1999 = vpop.f32.mrf.mxu0
        %v2000 = vpop.f32.mrf.mxu0
        %v2001 = vadd.f32 0.0, %v2000
        %v2002 = vpop.f32.mrf.mxu0
        %2003 = vmatprep.mubr.bf16.mxu0 0
        %2004 = vmatmul.mubr.bf16.gmra.mxu0 %v1927
        %v2005 = vpop.f32.mrf.mxu0
        %v2006 = vadd.f32 0.0, %v2005
        %v2007 = vpop.f32.mrf.mxu0
        %v2008 = vpop.f32.mrf.mxu0
        %v2009 = vadd.f32 0.0, %v2008
        %v2010 = vpop.f32.mrf.mxu0
        %2011 = vmatprep.mubr.bf16.mxu0 0
        %2012 = vmatmul.mubr.bf16.gmra.mxu0 %v1930
        %v2013 = vpop.f32.mrf.mxu0
        %v2014 = vadd.f32 0.0, %v2013
        %v2015 = vpop.f32.mrf.mxu0
        %v2016 = vpop.f32.mrf.mxu0
        %v2017 = vpop.f32.mrf.mxu0
        %2018 = vdwg.mxu0
        %v2019 = vsel %vm1024, %v1982, -inf
        %2020 = vmax.xlane.f32.xlu0 %v2019
        %v2021 = vpop.xlane.xlu0 %2020
        %v2022 = vsel %vm1024, %v1985, -inf
        %2023 = vmax.xlane.f32.xlu0 %v2022
        %v2024 = vpop.xlane.xlu0 %2023
        %v2025 = vsel %vm1024, %v1990, -inf
        %2026 = vmax.xlane.f32.xlu0 %v2025
        %v2027 = vpop.xlane.xlu0 %2026
        %v2028 = vsel %vm1024, %v1993, -inf
        %2029 = vmax.xlane.f32.xlu0 %v2028
        %v2030 = vpop.xlane.xlu0 %2029
        %v2031 = vsel %vm1024, %v1998, -inf
        %2032 = vmax.xlane.f32.xlu0 %v2031
        %v2033 = vpop.xlane.xlu0 %2032
        %v2034 = vsel %vm1024, %v2001, -inf
        %2035 = vmax.xlane.f32.xlu0 %v2034
        %v2036 = vpop.xlane.xlu0 %2035
        %v2037 = vsel %vm1024, %v2006, -inf
        %2038 = vmax.xlane.f32.xlu0 %v2037
        %v2039 = vpop.xlane.xlu0 %2038
        %v2040 = vsel %vm1024, %v2009, -inf
        %2041 = vmax.xlane.f32.xlu0 %v2040
        %v2042 = vpop.xlane.xlu0 %2041
        %v2043 = vsel %vm1049, %v2014, -inf
        %2044 = vmax.xlane.f32.xlu0 %v2043
        %v2045 = vpop.xlane.xlu0 %2044
        %v2046 = vsub.f32 %v1982, %v2021
        %v2047 = vsub.f32 %v1985, %v2024
        %v2048 = vsub.f32 %v1990, %v2027
        %v2049 = vsub.f32 %v1993, %v2030
        %v2050 = vsub.f32 %v1998, %v2033
        %v2051 = vsub.f32 %v2001, %v2036
        %v2052 = vsub.f32 %v2006, %v2039
        %v2053 = vsub.f32 %v2009, %v2042
        %v2054 = vsub.f32 %v2014, %v2045
        %v2055 = vmul.f32 %v2046, 1.442695
        %v2056 = vpow.pop %v2055
        %v2057 = vmul.f32 %v2047, 1.442695
        %v2058 = vpow.pop %v2057
        %v2059 = vmul.f32 %v2048, 1.442695
        %v2060 = vpow.pop %v2059
        %v2061 = vmul.f32 %v2049, 1.442695
        %v2062 = vpow.pop %v2061
        %v2063 = vmul.f32 %v2050, 1.442695
        %v2064 = vpow.pop %v2063
        %v2065 = vmul.f32 %v2051, 1.442695
        %v2066 = vpow.pop %v2065
        %v2067 = vmul.f32 %v2052, 1.442695
        %v2068 = vpow.pop %v2067
        %v2069 = vmul.f32 %v2053, 1.442695
        %v2070 = vpow.pop %v2069
        %v2071 = vmul.f32 %v2054, 1.442695
        %v2072 = vpow.pop %v2071
        %v2073 = vsel %vm1024, %v2056, 0.0
        %2074 = vadd.xlane.f32.xlu0 %v2073
        %v2075 = vpop.xlane.xlu0 %2074
        %v2076 = vsel %vm1024, %v2058, 0.0
        %2077 = vadd.xlane.f32.xlu0 %v2076
        %v2078 = vpop.xlane.xlu0 %2077
        %v2079 = vsel %vm1024, %v2060, 0.0
        %2080 = vadd.xlane.f32.xlu0 %v2079
        %v2081 = vpop.xlane.xlu0 %2080
        %v2082 = vsel %vm1024, %v2062, 0.0
        %2083 = vadd.xlane.f32.xlu0 %v2082
        %v2084 = vpop.xlane.xlu0 %2083
        %v2085 = vsel %vm1024, %v2064, 0.0
        %2086 = vadd.xlane.f32.xlu0 %v2085
        %v2087 = vpop.xlane.xlu0 %2086
        %v2088 = vsel %vm1024, %v2066, 0.0
        %2089 = vadd.xlane.f32.xlu0 %v2088
        %v2090 = vpop.xlane.xlu0 %2089
        %v2091 = vsel %vm1024, %v2068, 0.0
        %2092 = vadd.xlane.f32.xlu0 %v2091
        %v2093 = vpop.xlane.xlu0 %2092
        %v2094 = vsel %vm1024, %v2070, 0.0
        %2095 = vadd.xlane.f32.xlu0 %v2094
        %v2096 = vpop.xlane.xlu0 %2095
        %v2097 = vsel %vm1049, %v2072, 0.0
        %2098 = vadd.xlane.f32.xlu0 %v2097
        %v2099 = vpop.xlane.xlu0 %2098
        %v2100 = vrcp.pop %v2075
        %v2101 = vrcp.pop %v2078
        %v2102 = vrcp.pop %v2081
        %v2103 = vrcp.pop %v2084
        %v2104 = vrcp.pop %v2087
        %v2105 = vrcp.pop %v2090
        %v2106 = vrcp.pop %v2093
        %v2107 = vrcp.pop %v2096
        %v2108 = vrcp.pop %v2099
        %v2109 = vmul.f32 %v2056, %v2100
        %v2110 = vmul.f32 %v2058, %v2101
        %v2111 = vmul.f32 %v2060, %v2102
        %v2112 = vmul.f32 %v2062, %v2103
        %v2113 = vmul.f32 %v2064, %v2104
        %v2114 = vmul.f32 %v2066, %v2105
        %v2115 = vmul.f32 %v2068, %v2106
        %v2116 = vmul.f32 %v2070, %v2107
        %v2117 = vmul.f32 %v2072, %v2108
        %v2118 = vpack.c.bf16 %v2110, %v2109
        %v2119 = vpack.c.bf16 %v2112, %v2111
        %v2120 = vpack.c.bf16 %v2114, %v2113
        %v2121 = vpack.c.bf16 %v2116, %v2115
        %v2122 = vpack.c.bf16 %v2117, %v2117
        %2123 = vrot.lane.b32.xlu0 %v916, 80
        %v2124 = vpop.permute.xlu0 %2123
        %2125 = vrot.lane.b32.xlu0 %v917, 80
        %v2126 = vpop.permute.xlu0 %2125
        %2127 = vrot.lane.b32.xlu0 %v918, 80
        %v2128 = vpop.permute.xlu0 %2127
        %2129 = vrot.lane.b32.xlu0 %v919, 80
        %v2130 = vpop.permute.xlu0 %2129
        %2131 = vrot.lane.b32.xlu0 %v920, 80
        %v2132 = vpop.permute.xlu0 %2131
        %v2138 = vsel %vm1024, %v2118, 0
        %v2141 = vsel %vm1024, %v2119, 0
        %v2144 = vsel %vm1024, %v2120, 0
        %v2147 = vsel %vm1024, %v2121, 0
        %v2150 = vsel %vm1024, %v2122, 0
        %v2153 = vand.u32 %v2132, %v1146
        %2155 = vmatprep.subr.bf16.mxu0 0
        %2156 = vmatpush1.bf16.msra.mxu0 0
        %2157 = vmatprep.subr.bf16.mxu0 0
        %2158 = vmatpush1.bf16.msra.mxu0 0
        %2159 = vmatprep.subr.bf16.mxu0 0
        %2160 = vmatpush1.bf16.msra.mxu0 0
        %2161 = vmatprep.subr.bf16.mxu0 0
        %2162 = vmatpush1.bf16.msra.mxu0 %v2153
        %2163 = vmatprep.subr.bf16.mxu0 0
        %2164 = vmatpush1.bf16.msra.mxu0 %v2130
        %2165 = vmatprep.subr.bf16.mxu0 0
        %2166 = vmatpush1.bf16.msra.mxu0 %v2128
        %2167 = vmatprep.subr.bf16.mxu0 0
        %2168 = vmatpush1.bf16.msra.mxu0 %v2126
        %2169 = vmatprep.subr.bf16.mxu0 0
        %2170 = vmatpush1.bf16.msra.mxu0 %v2124
        %2171 = vmatprep.subr.bf16.mxu0 0
        %2172 = vmatpush2.bf16.msra.mxu0 0
        %2173 = vmatprep.subr.bf16.mxu0 0
        %2174 = vmatpush2.bf16.msra.mxu0 0
        %2175 = vmatprep.subr.bf16.mxu0 0
        %2176 = vmatpush2.bf16.msra.mxu0 0
        %2177 = vmatprep.subr.bf16.mxu0 0
        %2178 = vmatpush2.bf16.msra.mxu0 0
        %2179 = vmatprep.subr.bf16.mxu0 0
        %2180 = vmatpush2.bf16.msra.mxu0 0
        %2181 = vmatprep.subr.bf16.mxu0 0
        %2182 = vmatpush2.bf16.msra.mxu0 0
        %2183 = vmatprep.subr.bf16.mxu0 0
        %2184 = vmatpush2.bf16.msra.mxu0 0
        %2185 = vmatprep.subr.bf16.mxu0 0
        %2186 = vmatpush2.bf16.msra.mxu0 0
        %2187 = vmatprep.mubr.bf16.mxu0 0
        %2188 = vmatmul.mubr.bf16.gmra.mxu0 %v2138
        %v2189 = vpop.f32.mrf.mxu0
        %v2190 = vadd.f32 0.0, %v2189
        %v2191 = vpop.f32.mrf.mxu0
        %v2192 = vpop.f32.mrf.mxu0
        %v2193 = vadd.f32 0.0, %v2192
        %v2194 = vpop.f32.mrf.mxu0
        %2195 = vmatprep.mubr.bf16.mxu0 0
        %2196 = vmatmul.mubr.bf16.gmra.mxu0 %v2141
        %v2197 = vpop.f32.mrf.mxu0
        %v2198 = vadd.f32 0.0, %v2197
        %v2199 = vpop.f32.mrf.mxu0
        %v2200 = vpop.f32.mrf.mxu0
        %v2201 = vadd.f32 0.0, %v2200
        %v2202 = vpop.f32.mrf.mxu0
        %2203 = vmatprep.mubr.bf16.mxu0 0
        %2204 = vmatmul.mubr.bf16.gmra.mxu0 %v2144
        %v2205 = vpop.f32.mrf.mxu0
        %v2206 = vadd.f32 0.0, %v2205
        %v2207 = vpop.f32.mrf.mxu0
        %v2208 = vpop.f32.mrf.mxu0
        %v2209 = vadd.f32 0.0, %v2208
        %v2210 = vpop.f32.mrf.mxu0
        %2211 = vmatprep.mubr.bf16.mxu0 0
        %2212 = vmatmul.mubr.bf16.gmra.mxu0 %v2147
        %v2213 = vpop.f32.mrf.mxu0
        %v2214 = vadd.f32 0.0, %v2213
        %v2215 = vpop.f32.mrf.mxu0
        %v2216 = vpop.f32.mrf.mxu0
        %v2217 = vadd.f32 0.0, %v2216
        %v2218 = vpop.f32.mrf.mxu0
        %2219 = vmatprep.mubr.bf16.mxu0 0
        %2220 = vmatmul.mubr.bf16.gmra.mxu0 %v2150
        %v2221 = vpop.f32.mrf.mxu0
        %v2222 = vadd.f32 0.0, %v2221
        %v2223 = vpop.f32.mrf.mxu0
        %v2224 = vpop.f32.mrf.mxu0
        %v2225 = vpop.f32.mrf.mxu0
        %2226 = vdwg.mxu0
        %2236 = vrot.lane.b32.xlu0 %v1530, 16
        %v2237 = vpop.permute.xlu0 %2236
        %2238 = vrot.lane.b32.xlu0 %v1533, 16
        %v2239 = vpop.permute.xlu0 %2238
        %2240 = vrot.lane.b32.xlu0 %v1538, 16
        %v2241 = vpop.permute.xlu0 %2240
        %2242 = vrot.lane.b32.xlu0 %v1541, 16
        %v2243 = vpop.permute.xlu0 %2242
        %2244 = vrot.lane.b32.xlu0 %v1546, 16
        %v2245 = vpop.permute.xlu0 %2244
        %2246 = vrot.lane.b32.xlu0 %v1549, 16
        %v2247 = vpop.permute.xlu0 %2246
        %2248 = vrot.lane.b32.xlu0 %v1554, 16
        %v2249 = vpop.permute.xlu0 %2248
        %2250 = vrot.lane.b32.xlu0 %v1557, 16
        %v2251 = vpop.permute.xlu0 %2250
        %2252 = vrot.lane.b32.xlu0 %v1562, 16
        %v2253 = vpop.permute.xlu0 %2252
        %2272 = vrot.lane.b32.xlu0 %v1860, 32
        %v2273 = vpop.permute.xlu0 %2272
        %2274 = vrot.lane.b32.xlu0 %v1863, 32
        %v2275 = vpop.permute.xlu0 %2274
        %2276 = vrot.lane.b32.xlu0 %v1868, 32
        %v2277 = vpop.permute.xlu0 %2276
        %2278 = vrot.lane.b32.xlu0 %v1871, 32
        %v2279 = vpop.permute.xlu0 %2278
        %2280 = vrot.lane.b32.xlu0 %v1876, 32
        %v2281 = vpop.permute.xlu0 %2280
        %2282 = vrot.lane.b32.xlu0 %v1879, 32
        %v2283 = vpop.permute.xlu0 %2282
        %2284 = vrot.lane.b32.xlu0 %v1884, 32
        %v2285 = vpop.permute.xlu0 %2284
        %2286 = vrot.lane.b32.xlu0 %v1887, 32
        %v2287 = vpop.permute.xlu0 %2286
        %2288 = vrot.lane.b32.xlu0 %v1892, 32
        %v2289 = vpop.permute.xlu0 %2288
        %2308 = vrot.lane.b32.xlu0 %v2190, 48
        %v2309 = vpop.permute.xlu0 %2308
        %2310 = vrot.lane.b32.xlu0 %v2193, 48
        %v2311 = vpop.permute.xlu0 %2310
        %2312 = vrot.lane.b32.xlu0 %v2198, 48
        %v2313 = vpop.permute.xlu0 %2312
        %2314 = vrot.lane.b32.xlu0 %v2201, 48
        %v2315 = vpop.permute.xlu0 %2314
        %2316 = vrot.lane.b32.xlu0 %v2206, 48
        %v2317 = vpop.permute.xlu0 %2316
        %2318 = vrot.lane.b32.xlu0 %v2209, 48
        %v2319 = vpop.permute.xlu0 %2318
        %2320 = vrot.lane.b32.xlu0 %v2214, 48
        %v2321 = vpop.permute.xlu0 %2320
        %2322 = vrot.lane.b32.xlu0 %v2217, 48
        %v2323 = vpop.permute.xlu0 %2322
        %2324 = vrot.lane.b32.xlu0 %v2222, 48
        %v2325 = vpop.permute.xlu0 %2324
        %v2335 = vsel %vm921, %v1185, %v2237
        %v2336 = vsel %vm921, %v1188, %v2239
        %v2337 = vsel %vm921, %v1193, %v2241
        %v2338 = vsel %vm921, %v1196, %v2243
        %v2339 = vsel %vm921, %v1201, %v2245
        %v2340 = vsel %vm921, %v1204, %v2247
        %v2341 = vsel %vm921, %v1209, %v2249
        %v2342 = vsel %vm921, %v1212, %v2251
        %v2343 = vsel %vm921, %v1217, %v2253
        %vm2344 = vcmask 261120
        %v2345 = vsel %vm2344, %v2335, %v2273
        %v2346 = vsel %vm2344, %v2336, %v2275
        %v2347 = vsel %vm2344, %v2337, %v2277
        %v2348 = vsel %vm2344, %v2338, %v2279
        %v2349 = vsel %vm2344, %v2339, %v2281
        %v2350 = vsel %vm2344, %v2340, %v2283
        %v2351 = vsel %vm2344, %v2341, %v2285
        %v2352 = vsel %vm2344, %v2342, %v2287
        %v2353 = vsel %vm2344, %v2343, %v2289
        %vm2354 = vcmask 392192
        %v2355 = vsel %vm2354, %v2345, %v2309
        %v2356 = vsel %vm2354, %v2346, %v2311
        %v2357 = vsel %vm2354, %v2347, %v2313
        %v2358 = vsel %vm2354, %v2348, %v2315
        %v2359 = vsel %vm2354, %v2349, %v2317
        %v2360 = vsel %vm2354, %v2350, %v2319
        %v2361 = vsel %vm2354, %v2351, %v2321
        %v2362 = vsel %vm2354, %v2352, %v2323
        %v2363 = vsel %vm2354, %v2353, %v2325
        %v2364 = vpack.c.bf16 %v2356, %v2355
        %v2365 = vpack.c.bf16 %v2358, %v2357
        %v2366 = vpack.c.bf16 %v2360, %v2359
        %v2367 = vpack.c.bf16 %v2362, %v2361
        %v2368 = vpack.c.bf16 %v2363, %v2363
        %v2369 = vld [vmem:[#allocation7] sm:$0xf]
        %v2370 = vld [vmem:[#allocation7 + $0x4] sm:$0xf]
        %v2371 = vld [vmem:[#allocation7 + $0x8] sm:$0xf]
        %v2372 = vld [vmem:[#allocation7 + $0xc] sm:$0xf]
        %v2373 = vld [vmem:[#allocation7 + $0x10] sm:$0xf]
        %v2374 = vld [vmem:[#allocation7 + $0x14] sm:$0xf]
        %v2375 = vld [vmem:[#allocation7 + $0x18] sm:$0xf]
        %v2376 = vld [vmem:[#allocation7 + $0x1c] sm:$0xf]
        %v2377 = vld [vmem:[%s9] sm:$0x1]
        %v2379 = vlaneseq
        %v2380 = vshrl.u32 %v2379, 7
        %v2381 = vsub.s32 0, %v2380
        %v2382 = vrot.slane %v2377, %v2381
        %v2392 = vunpack.c.l.b16 %v2369
        %v2393 = vunpack.c.l.b16 %v2370
        %v2394 = vunpack.c.l.b16 %v2371
        %v2395 = vunpack.c.l.b16 %v2372
        %v2396 = vunpack.c.l.b16 %v2373
        %v2397 = vunpack.c.l.b16 %v2374
        %v2398 = vunpack.c.l.b16 %v2375
        %v2399 = vunpack.c.l.b16 %v2376
        %v2400 = vpack.c.b16 %v2393, %v2392
        %v2401 = vpack.c.b16 %v2395, %v2394
        %v2402 = vpack.c.b16 %v2397, %v2396
        %v2403 = vpack.c.b16 %v2399, %v2398
        %v2409 = vsel %vm468, %v2364, 0
        %v2412 = vsel %vm468, %v2365, 0
        %v2415 = vsel %vm468, %v2366, 0
        %v2418 = vsel %vm468, %v2367, 0
        %v2421 = vsel %vm468, %v2368, 0
        %2423 = vmatprep.subr.bf16.mxu0 0
        %2424 = vmatpush1.bf16.msra.mxu0 0
        %2425 = vmatprep.subr.bf16.mxu0 0
        %2426 = vmatpush1.bf16.msra.mxu0 0
        %2427 = vmatprep.subr.bf16.mxu0 0
        %2428 = vmatpush1.bf16.msra.mxu0 0
        %2429 = vmatprep.subr.bf16.mxu0 0
        %2430 = vmatpush1.bf16.msra.mxu0 0
        %2431 = vmatprep.subr.bf16.mxu0 0
        %2432 = vmatpush1.bf16.msra.mxu0 %v2403
        %2433 = vmatprep.subr.bf16.mxu0 0
        %2434 = vmatpush1.bf16.msra.mxu0 %v2402
        %2435 = vmatprep.subr.bf16.mxu0 0
        %2436 = vmatpush1.bf16.msra.mxu0 %v2401
        %2437 = vmatprep.subr.bf16.mxu0 0
        %2438 = vmatpush1.bf16.msra.mxu0 %v2400
        %2439 = vmatprep.subr.bf16.mxu0 0
        %2440 = vmatpush2.bf16.msra.mxu0 0
        %2441 = vmatprep.subr.bf16.mxu0 0
        %2442 = vmatpush2.bf16.msra.mxu0 0
        %2443 = vmatprep.subr.bf16.mxu0 0
        %2444 = vmatpush2.bf16.msra.mxu0 0
        %2445 = vmatprep.subr.bf16.mxu0 0
        %2446 = vmatpush2.bf16.msra.mxu0 0
        %2447 = vmatprep.subr.bf16.mxu0 0
        %2448 = vmatpush2.bf16.msra.mxu0 0
        %2449 = vmatprep.subr.bf16.mxu0 0
        %2450 = vmatpush2.bf16.msra.mxu0 0
        %2451 = vmatprep.subr.bf16.mxu0 0
        %2452 = vmatpush2.bf16.msra.mxu0 0
        %2453 = vmatprep.subr.bf16.mxu0 0
        %2454 = vmatpush2.bf16.msra.mxu0 0
        %2455 = vmatprep.mubr.bf16.mxu0 0
        %2456 = vmatmul.mubr.bf16.gmra.mxu0 %v2409
        %v2457 = vpop.f32.mrf.mxu0
        %v2458 = vadd.f32 %v2382, %v2457
        %v2459 = vpop.f32.mrf.mxu0
        %v2460 = vpop.f32.mrf.mxu0
        %v2461 = vadd.f32 %v2382, %v2460
        %v2462 = vpop.f32.mrf.mxu0
        %2463 = vmatprep.mubr.bf16.mxu0 0
        %2464 = vmatmul.mubr.bf16.gmra.mxu0 %v2412
        %v2465 = vpop.f32.mrf.mxu0
        %v2466 = vadd.f32 %v2382, %v2465
        %v2467 = vpop.f32.mrf.mxu0
        %v2468 = vpop.f32.mrf.mxu0
        %v2469 = vadd.f32 %v2382, %v2468
        %v2470 = vpop.f32.mrf.mxu0
        %2471 = vmatprep.mubr.bf16.mxu0 0
        %2472 = vmatmul.mubr.bf16.gmra.mxu0 %v2415
        %v2473 = vpop.f32.mrf.mxu0
        %v2474 = vadd.f32 %v2382, %v2473
        %v2475 = vpop.f32.mrf.mxu0
        %v2476 = vpop.f32.mrf.mxu0
        %v2477 = vadd.f32 %v2382, %v2476
        %v2478 = vpop.f32.mrf.mxu0
        %2479 = vmatprep.mubr.bf16.mxu0 0
        %2480 = vmatmul.mubr.bf16.gmra.mxu0 %v2418
        %v2481 = vpop.f32.mrf.mxu0
        %v2482 = vadd.f32 %v2382, %v2481
        %v2483 = vpop.f32.mrf.mxu0
        %v2484 = vpop.f32.mrf.mxu0
        %v2485 = vadd.f32 %v2382, %v2484
        %v2486 = vpop.f32.mrf.mxu0
        %2487 = vmatprep.mubr.bf16.mxu0 0
        %2488 = vmatmul.mubr.bf16.gmra.mxu0 %v2421
        %v2489 = vpop.f32.mrf.mxu0
        %v2490 = vadd.f32 %v2382, %v2489
        %v2491 = vpop.f32.mrf.mxu0
        %v2492 = vpop.f32.mrf.mxu0
        %v2493 = vpop.f32.mrf.mxu0
        %2494 = vdwg.mxu0
        %2495 = vst [vmem:[%s418] sm:$0xff] %v2458
        %2496 = vst [vmem:[%s418 + $0x8] sm:$0xff] %v2461
        %2497 = vst [vmem:[%s418 + $0x10] sm:$0xff] %v2466
        %2498 = vst [vmem:[%s418 + $0x18] sm:$0xff] %v2469
        %2499 = vst [vmem:[%s418 + $0x20] sm:$0xff] %v2474
        %2500 = vst [vmem:[%s418 + $0x28] sm:$0xff] %v2477
        %2501 = vst [vmem:[%s418 + $0x30] sm:$0xff] %v2482
        %2502 = vst [vmem:[%s418 + $0x38] sm:$0xff] %v2485
        %2503 = vst [vmem:[%s418 + $0x40] sm:$0x1] %v2490
        %p2504 = scmp.lt.s32.totalorder %s24, 1
        %s2505 = scalar_select %p2504, %s24, 1
        %s2506 = smul.addr %s2505, 9
        %s2507 = smul.addr %s2506, 8
        %s2508 = scalar_lea.vmem %s10, %s2507
        // Predicated region
        $region77: #{tpu_custom_call.1} parent=59 // pred_check
          %p2509 = pneg %p257
        $region78: #{tpu_custom_call.1} parent=59 // pred_check_branch
          %2511 = sbr.rel (%p2509) target = $region80
        $region79: #{tpu_custom_call.1} parent=59 // pred_region
          _
        $region80: #{tpu_custom_call.1} parent=59 // pred_fallthru
          _
      $region60: #{tpu_custom_call.1} parent=5 // pred_fallthru
        _
      %p2512 = scmp.le.s32.totalorder 2, %s19
      // Predicated region
      $region81: #{tpu_custom_call.1} parent=5 // pred_check
        %p2513 = pneg %p2512
      $region82: #{tpu_custom_call.1} parent=5 // pred_check_branch
        %2515 = sbr.rel (%p2513) target = $region84
      $region83: #{tpu_custom_call.1} parent=5 // pred_region
        %s2516 = ssub.s32 %s19, 2
        // Predicated region
        $region85: #{tpu_custom_call.1} parent=83 // pred_check
          %p2517 = pneg %p263
        $region86: #{tpu_custom_call.1} parent=83 // pred_check_branch
          %2519 = sbr.rel (%p2517) target = $region88
        $region87: #{tpu_custom_call.1} parent=83 // pred_region
          %p2520 = scmp.lt.s32.totalorder %s25, 1
          %s2521 = scalar_select %p2520, %s25, 1
          %s2522 = smul.addr %s2521, 9
          %s2523 = smul.addr %s2522, 8
          %s2524 = scalar_lea.vmem %s10, %s2523
        $region88: #{tpu_custom_call.1} parent=83 // pred_fallthru
          _
      $region84: #{tpu_custom_call.1} parent=5 // pred_fallthru
        _
    $region6: #{tpu_custom_call.1} parent=1 // loop_footer
      %s23 = sadd.s32 1, %s19
    $region7: #{tpu_custom_call.1} parent=1 // loop_footer_branch
      %18 = sbr.rel target = $region3
    $region8: #{tpu_custom_call.1} parent=1 // loop_exit
      _
    %2525 = vsyncpa [#allocation3], 1
    %s2526 = scalar_lea.sflag [#allocation3], 1
    %2527 = vsyncpa %s2526, 1
    %2528 = vsyncpa [#allocation5], 1
    %2529 = vsyncpa [#allocation8], 1

</llo_original>
